<compile_context>
chip_gen: v7x
topology: tpu7x:2x2x1
jax: 0.10.0
libtpu: 0.0.40
codegen_flags: <defaults>
</compile_context>

<pallas_src>
import functools

import jax
import jax.numpy as jnp
from jax.experimental import pallas as pl
from jax.experimental.pallas import tpu as pltpu


# ----------------------------- in-kernel helpers -----------------------------

def _silu(x):
    # x * sigmoid(x), written with exp + divide (guaranteed Mosaic lowering).
    return x / (1.0 + jnp.exp(-x))


def _conv1x1(wt, x):
    """1x1 conv as a sum of rank-1 outer products: wt (Cout, Cin), x (Cin, M).

    The test channel counts (<= 8) are far below one MXU tile, so a VPU
    broadcast-multiply accumulate is cheaper and more robust than a padded
    MXU matmul.
    # TODO(synk): for production SPP widths (Cin/Cout >= 128) switch this to
    # jnp.dot(wt, x, preferred_element_type=jnp.float32) so it runs on the MXU.
    """
    cin = wt.shape[1]
    acc = wt[:, 0:1] * x[0:1, :]
    for c in range(1, cin):
        acc = acc + wt[:, c:c + 1] * x[c:c + 1, :]
    return acc


def _shift_down(x, d):
    """out[:, i] = x[:, i + d] for i + d < L, else -inf   (static d > 0)."""
    c, l = x.shape
    fill = jnp.full((c, d), -jnp.inf, x.dtype)
    return jnp.concatenate([x[:, d:], fill], axis=1)


def _shift_up(x, d):
    """out[:, i] = x[:, i - d] for i - d >= 0, else -inf  (static d > 0)."""
    c, l = x.shape
    fill = jnp.full((c, d), -jnp.inf, x.dtype)
    return jnp.concatenate([fill, x[:, : l - d]], axis=1)


def _maxpool_same_flat(x, k, h, w):
    """MaxPool2d(kernel_size=k, stride=1, padding=k//2) on a channels-major,
    spatially-flattened tile x of shape (C, h*w).

    Separable shifted-max; out-of-image neighbours behave as -inf, matching
    PyTorch's implicit max-pool padding.  Everything stays on the lane-dense
    flat spatial axis (no reshape to (H, W) inside the kernel).
    """
    r = k // 2
    col = jax.lax.broadcasted_iota(jnp.int32, x.shape, 1) % w

    # Pool along W: neighbours at +-s in the flat index, masked at row edges.
    out = x
    for s in range(1, min(r, w - 1) + 1):
        plus = jnp.where(col < w - s, _shift_down(x, s), -jnp.inf)
        minus = jnp.where(col >= s, _shift_up(x, s), -jnp.inf)
        out = jnp.maximum(out, jnp.maximum(plus, minus))

    # Pool along H: neighbours at +-s*w in the flat index; the flat-array ends
    # coincide with the image top/bottom, so the -inf fill is the only mask
    # needed.
    x = out
    out = x
    for s in range(1, min(r, h - 1) + 1):
        d = s * w
        out = jnp.maximum(out, jnp.maximum(_shift_down(x, d), _shift_up(x, d)))
    return out


# ---------------------------------- kernel -----------------------------------

def _spp_kernel(x_ref, w1_ref, b1_ref, w2_ref, b2_ref, o_ref, *, h, w, pool_ks):
    # x_ref block: (1, C1, H*W) -> (C1, H*W) for this batch element.
    x = x_ref[0].astype(jnp.float32)

    # cv1: 1x1 conv (BN scale folded into w1) + BN shift + SiLU.
    y = _conv1x1(w1_ref[...], x) + b1_ref[...]            # (C_, H*W)
    y = _silu(y)

    # SPP max pools; order matches torch.cat([x] + [m(x) for m in self.m], 1).
    feats = [y] + [_maxpool_same_flat(y, k, h, w) for k in pool_ks]

    # cv2: 1x1 conv over the (virtual) channel concat.  w2_ref is pre-split
    # per feature group, so we accumulate group contributions instead of
    # concatenating inside the kernel.
    z = _conv1x1(w2_ref[0], feats[0])
    for f in range(1, len(feats)):
        z = z + _conv1x1(w2_ref[f], feats[f])
    z = _silu(z + b2_ref[...])                             # (C2, H*W)

    o_ref[0] = z.astype(o_ref.dtype)


# --------------------------------- wrapper ------------------------------------

def _fold_bn(gamma, beta, mean, var, eps=1e-5):
    """Inference-mode BatchNorm as y*scale + shift."""
    scale = gamma.astype(jnp.float32) / jnp.sqrt(var.astype(jnp.float32) + eps)
    shift = beta.astype(jnp.float32) - mean.astype(jnp.float32) * scale
    return scale, shift


def spp_forward(x, w1, bn1, w2, bn2, pool_ks=(5, 9, 13), eps=1e-5):
    """SPP forward.  x: (N, C1, H, W) NCHW.  w1: (C_, C1) 1x1-conv weight,
    w2: (C2, C_*(len(k)+1)) 1x1-conv weight, bn* = (gamma, beta, mean, var)."""
    n, c1, h, w = x.shape
    c_hidden = w1.shape[0]
    c2 = w2.shape[0]
    nf = len(pool_ks) + 1
    assert w2.shape[1] == nf * c_hidden
    hw = h * w

    # Fold BN (eval mode) into the conv weights / per-channel shifts.
    s1, t1 = _fold_bn(*bn1, eps=eps)
    s2, t2 = _fold_bn(*bn2, eps=eps)
    w1f = w1.astype(jnp.float32) * s1[:, None]                       # (C_, C1)
    w2f = (w2.astype(jnp.float32) * s2[:, None]).reshape(c2, nf, c_hidden)
    w2f = w2f.transpose(1, 0, 2)                                     # (F, C2, C_)
    b1 = t1.reshape(c_hidden, 1)
    b2 = t2.reshape(c2, 1)

    # Lane-dense view: last dim = H*W (multiple of 128 for 16x16 -> unmasked
    # stores).  This is a free reshape of the contiguous NCHW tensor.
    x_flat = x.reshape(n, c1, hw)

    kernel = functools.partial(_spp_kernel, h=h, w=w, pool_ks=tuple(pool_ks))

    # TODO(synk): for very large C*H*W per image, tile the spatial axis with
    # pooling halos instead of holding a full (C, H*W) plane per grid step.
    out = pl.pallas_call(
        kernel,
        out_shape=jax.ShapeDtypeStruct((n, c2, hw), x.dtype),
        grid_spec=pltpu.PrefetchScalarGridSpec(
            num_scalar_prefetch=0,
            grid=(n,),
            in_specs=[
                pl.BlockSpec((1, c1, hw), lambda i: (i, 0, 0)),
                pl.BlockSpec((c_hidden, c1), lambda i: (0, 0)),
                pl.BlockSpec((c_hidden, 1), lambda i: (0, 0)),
                pl.BlockSpec((nf, c2, c_hidden), lambda i: (0, 0, 0)),
                pl.BlockSpec((c2, 1), lambda i: (0, 0)),
            ],
            out_specs=pl.BlockSpec((1, c2, hw), lambda i: (i, 0, 0)),
        ),
        compiler_params=pltpu.CompilerParams(
            dimension_semantics=("parallel",),
        ),
    )(x_flat, w1f, b1, w2f, b2)

    return out.reshape(n, c2, h, w)


# ------------------------------ pure-JAX reference ----------------------------

def _spp_ref(x, w1, bn1, w2, bn2, pool_ks=(5, 9, 13), eps=1e-5):
    def conv_bn_silu(v, wt, bn):
        gamma, beta, mean, var = bn
        y = jnp.einsum('oc,nchw->nohw', wt, v)
        y = (y - mean[None, :, None, None]) / jnp.sqrt(var[None, :, None, None] + eps)
        y = y * gamma[None, :, None, None] + beta[None, :, None, None]
        return y / (1.0 + jnp.exp(-y))      # SiLU

    y = conv_bn_silu(x, w1, bn1)
    feats = [y]
    for k in pool_ks:
        r = k // 2
        feats.append(jax.lax.reduce_window(
            y, jnp.array(-jnp.inf, dtype=y.dtype), jax.lax.max,
            window_dimensions=(1, 1, k, k),
            window_strides=(1, 1, 1, 1),
            padding=((0, 0), (0, 0), (r, r), (r, r))))
    cat = jnp.concatenate(feats, axis=1)
    return conv_bn_silu(cat, w2, bn2)


# ----------------------------------- test --------------------------------------

if __name__ == "__main__":
    keys = jax.random.split(jax.random.PRNGKey(0), 11)
    n, c1, h, w = 2, 4, 16, 16
    c2 = 4
    pool_ks = (5, 9, 13)
    c_ = c1 // 2
    nf = len(pool_ks) + 1

    x = jax.random.normal(keys[0], (n, c1, h, w), dtype=jnp.float32)
    w1 = jax.random.normal(keys[1], (c_, c1), dtype=jnp.float32) * 0.5
    bn1 = (jax.random.uniform(keys[2], (c_,), jnp.float32, 0.5, 1.5),
           jax.random.normal(keys[3], (c_,), jnp.float32) * 0.1,
           jax.random.normal(keys[4], (c_,), jnp.float32) * 0.1,
           jax.random.uniform(keys[5], (c_,), jnp.float32, 0.5, 1.5))
    w2 = jax.random.normal(keys[6], (c2, nf * c_), dtype=jnp.float32) * 0.5
    bn2 = (jax.random.uniform(keys[7], (c2,), jnp.float32, 0.5, 1.5),
           jax.random.normal(keys[8], (c2,), jnp.float32) * 0.1,
           jax.random.normal(keys[9], (c2,), jnp.float32) * 0.1,
           jax.random.uniform(keys[10], (c2,), jnp.float32, 0.5, 1.5))

    y = spp_forward(x, w1, bn1, w2, bn2, pool_ks)
    jax.block_until_ready(y)

    y_ref = _spp_ref(x, w1, bn1, w2, bn2, pool_ks)
    assert y.shape == (n, c2, h, w) and y.dtype == x.dtype
    max_err = float(jnp.max(jnp.abs(y - y_ref)))
    assert jnp.allclose(y, y_ref, atol=1e-4, rtol=1e-4), f"max_err={max_err}"
    print("KERNEL_OK")
</pallas_src>

<mosaic_0001>
module attributes {stable_mosaic.version = 11 : i64} {
  func.func @_spp_kernel(%arg0: i32, %arg1: memref<1x4x256xf32, #tpu.memory_space<vmem>>, %arg2: memref<2x4xf32, #tpu.memory_space<vmem>>, %arg3: memref<2x1xf32, #tpu.memory_space<vmem>>, %arg4: memref<4x4x2xf32, #tpu.memory_space<vmem>>, %arg5: memref<4x1xf32, #tpu.memory_space<vmem>>, %arg6: memref<1x4x256xf32, #tpu.memory_space<vmem>>) attributes {dimension_semantics = [#tpu.dimension_semantics<parallel>], iteration_bounds = array<i64: 2>, scalar_prefetch = 0 : i64, scratch_operands = 0 : i64, tpu.core_type = #tpu.core_type<tc>, window_params = [{transform_indices = @transform_0, window_bounds = array<i64: 1, 4, 256>}, {pipeline_mode = #tpu.pipeline_mode<synchronous>, transform_indices = @transform_1, window_bounds = array<i64: 2, 4>}, {pipeline_mode = #tpu.pipeline_mode<synchronous>, transform_indices = @transform_2, window_bounds = array<i64: 2, 1>}, {pipeline_mode = #tpu.pipeline_mode<synchronous>, transform_indices = @transform_3, window_bounds = array<i64: 4, 4, 2>}, {pipeline_mode = #tpu.pipeline_mode<synchronous>, transform_indices = @transform_4, window_bounds = array<i64: 4, 1>}, {transform_indices = @transform_5, window_bounds = array<i64: 1, 4, 256>}]} {
    %c0 = arith.constant 0 : index
    %c0_0 = arith.constant 0 : index
    %c0_1 = arith.constant 0 : index
    %0 = vector.load %arg1[%c0, %c0_0, %c0_1] : memref<1x4x256xf32, #tpu.memory_space<vmem>>, vector<1x4x256xf32>
    %1 = vector.shape_cast %0 : vector<1x4x256xf32> to vector<4x256xf32>
    %c0_2 = arith.constant 0 : index
    %c0_3 = arith.constant 0 : index
    %2 = vector.load %arg2[%c0_2, %c0_3] : memref<2x4xf32, #tpu.memory_space<vmem>>, vector<2x4xf32>
    %3 = vector.extract_strided_slice %2 {offsets = [0, 0], sizes = [2, 1], strides = [1, 1]} : vector<2x4xf32> to vector<2x1xf32>
    %4 = vector.extract_strided_slice %1 {offsets = [0, 0], sizes = [1, 256], strides = [1, 1]} : vector<4x256xf32> to vector<1x256xf32>
    %5 = vector.broadcast %3 : vector<2x1xf32> to vector<2x256xf32>
    %6 = vector.broadcast %4 : vector<1x256xf32> to vector<2x256xf32>
    %7 = arith.mulf %5, %6 : vector<2x256xf32>
    %8 = vector.extract_strided_slice %2 {offsets = [0, 1], sizes = [2, 1], strides = [1, 1]} : vector<2x4xf32> to vector<2x1xf32>
    %9 = vector.extract_strided_slice %1 {offsets = [1, 0], sizes = [1, 256], strides = [1, 1]} : vector<4x256xf32> to vector<1x256xf32>
    %10 = vector.broadcast %8 : vector<2x1xf32> to vector<2x256xf32>
    %11 = vector.broadcast %9 : vector<1x256xf32> to vector<2x256xf32>
    %12 = arith.mulf %10, %11 : vector<2x256xf32>
    %13 = arith.addf %7, %12 : vector<2x256xf32>
    %14 = vector.extract_strided_slice %2 {offsets = [0, 2], sizes = [2, 1], strides = [1, 1]} : vector<2x4xf32> to vector<2x1xf32>
    %15 = vector.extract_strided_slice %1 {offsets = [2, 0], sizes = [1, 256], strides = [1, 1]} : vector<4x256xf32> to vector<1x256xf32>
    %16 = vector.broadcast %14 : vector<2x1xf32> to vector<2x256xf32>
    %17 = vector.broadcast %15 : vector<1x256xf32> to vector<2x256xf32>
    %18 = arith.mulf %16, %17 : vector<2x256xf32>
    %19 = arith.addf %13, %18 : vector<2x256xf32>
    %20 = vector.extract_strided_slice %2 {offsets = [0, 3], sizes = [2, 1], strides = [1, 1]} : vector<2x4xf32> to vector<2x1xf32>
    %21 = vector.extract_strided_slice %1 {offsets = [3, 0], sizes = [1, 256], strides = [1, 1]} : vector<4x256xf32> to vector<1x256xf32>
    %22 = vector.broadcast %20 : vector<2x1xf32> to vector<2x256xf32>
    %23 = vector.broadcast %21 : vector<1x256xf32> to vector<2x256xf32>
    %24 = arith.mulf %22, %23 : vector<2x256xf32>
    %25 = arith.addf %19, %24 : vector<2x256xf32>
    %c0_4 = arith.constant 0 : index
    %c0_5 = arith.constant 0 : index
    %26 = vector.load %arg3[%c0_4, %c0_5] : memref<2x1xf32, #tpu.memory_space<vmem>>, vector<2x1xf32>
    %27 = vector.broadcast %26 : vector<2x1xf32> to vector<2x256xf32>
    %28 = arith.addf %25, %27 : vector<2x256xf32>
    %cst = arith.constant 0.000000e+00 : f32
    %29 = vector.broadcast %cst : f32 to vector<2x256xf32>
    %30 = arith.subf %29, %28 : vector<2x256xf32>
    %31 = math.exp %30 : vector<2x256xf32>
    %cst_6 = arith.constant 1.000000e+00 : f32
    %32 = vector.broadcast %cst_6 : f32 to vector<2x256xf32>
    %33 = arith.addf %32, %31 : vector<2x256xf32>
    %34 = arith.divf %28, %33 : vector<2x256xf32>
    %35 = tpu.iota {dimensions = array<i32: 1>} : vector<2x256xi32>
    %c16_i32 = arith.constant 16 : i32
    %c0_i32 = arith.constant 0 : i32
    %36 = arith.cmpi eq, %c16_i32, %c0_i32 : i32
    %c1_i32 = arith.constant 1 : i32
    %37 = arith.select %36, %c1_i32, %c16_i32 : i32
    %38 = vector.broadcast %37 : i32 to vector<2x256xi32>
    %39 = arith.remsi %35, %38 : vector<2x256xi32>
    %c0_i32_7 = arith.constant 0 : i32
    %40 = vector.broadcast %c0_i32_7 : i32 to vector<2x256xi32>
    %41 = arith.cmpi ne, %39, %40 : vector<2x256xi32>
    %c0_i32_8 = arith.constant 0 : i32
    %42 = vector.broadcast %c0_i32_8 : i32 to vector<2x256xi32>
    %43 = arith.cmpi slt, %39, %42 : vector<2x256xi32>
    %c0_i32_9 = arith.constant 0 : i32
    %44 = arith.cmpi slt, %37, %c0_i32_9 : i32
    %45 = vector.broadcast %44 : i1 to vector<2x256xi1>
    %46 = vector.broadcast %45 : vector<2x256xi1> to vector<2x256xi1>
    %47 = arith.xori %43, %46 : vector<2x256xi1>
    %48 = arith.andi %47, %41 : vector<2x256xi1>
    %49 = vector.broadcast %37 : i32 to vector<2x256xi32>
    %50 = arith.addi %39, %49 : vector<2x256xi32>
    %51 = arith.select %48, %50, %39 : vector<2x256xi1>, vector<2x256xi32>
    %c15_i32 = arith.constant 15 : i32
    %52 = vector.broadcast %c15_i32 : i32 to vector<2x256xi32>
    %53 = arith.cmpi slt, %51, %52 : vector<2x256xi32>
    %cst_10 = arith.constant 0xFF800000 : f32
    %54 = vector.broadcast %cst_10 : f32 to vector<2x1xf32>
    %55 = vector.extract_strided_slice %34 {offsets = [0, 1], sizes = [2, 255], strides = [1, 1]} : vector<2x256xf32> to vector<2x255xf32>
    %56 = tpu.concatenate %55, %54 in 1 : vector<2x255xf32>, vector<2x1xf32> -> vector<2x256xf32>
    %cst_11 = arith.constant 0xFF800000 : f32
    %57 = vector.broadcast %cst_11 : f32 to vector<2x256xf32>
    %58 = arith.select %53, %56, %57 : vector<2x256xi1>, vector<2x256xf32>
    %c1_i32_12 = arith.constant 1 : i32
    %59 = vector.broadcast %c1_i32_12 : i32 to vector<2x256xi32>
    %60 = arith.cmpi sge, %51, %59 : vector<2x256xi32>
    %cst_13 = arith.constant 0xFF800000 : f32
    %61 = vector.broadcast %cst_13 : f32 to vector<2x1xf32>
    %62 = vector.extract_strided_slice %34 {offsets = [0, 0], sizes = [2, 255], strides = [1, 1]} : vector<2x256xf32> to vector<2x255xf32>
    %63 = tpu.concatenate %61, %62 in 1 : vector<2x1xf32>, vector<2x255xf32> -> vector<2x256xf32>
    %cst_14 = arith.constant 0xFF800000 : f32
    %64 = vector.broadcast %cst_14 : f32 to vector<2x256xf32>
    %65 = arith.select %60, %63, %64 : vector<2x256xi1>, vector<2x256xf32>
    %66 = arith.maximumf %58, %65 : vector<2x256xf32>
    %67 = arith.maximumf %34, %66 : vector<2x256xf32>
    %c14_i32 = arith.constant 14 : i32
    %68 = vector.broadcast %c14_i32 : i32 to vector<2x256xi32>
    %69 = arith.cmpi slt, %51, %68 : vector<2x256xi32>
    %cst_15 = arith.constant 0xFF800000 : f32
    %70 = vector.broadcast %cst_15 : f32 to vector<2x2xf32>
    %71 = vector.extract_strided_slice %34 {offsets = [0, 2], sizes = [2, 254], strides = [1, 1]} : vector<2x256xf32> to vector<2x254xf32>
    %72 = tpu.concatenate %71, %70 in 1 : vector<2x254xf32>, vector<2x2xf32> -> vector<2x256xf32>
    %cst_16 = arith.constant 0xFF800000 : f32
    %73 = vector.broadcast %cst_16 : f32 to vector<2x256xf32>
    %74 = arith.select %69, %72, %73 : vector<2x256xi1>, vector<2x256xf32>
    %c2_i32 = arith.constant 2 : i32
    %75 = vector.broadcast %c2_i32 : i32 to vector<2x256xi32>
    %76 = arith.cmpi sge, %51, %75 : vector<2x256xi32>
    %cst_17 = arith.constant 0xFF800000 : f32
    %77 = vector.broadcast %cst_17 : f32 to vector<2x2xf32>
    %78 = vector.extract_strided_slice %34 {offsets = [0, 0], sizes = [2, 254], strides = [1, 1]} : vector<2x256xf32> to vector<2x254xf32>
    %79 = tpu.concatenate %77, %78 in 1 : vector<2x2xf32>, vector<2x254xf32> -> vector<2x256xf32>
    %cst_18 = arith.constant 0xFF800000 : f32
    %80 = vector.broadcast %cst_18 : f32 to vector<2x256xf32>
    %81 = arith.select %76, %79, %80 : vector<2x256xi1>, vector<2x256xf32>
    %82 = arith.maximumf %74, %81 : vector<2x256xf32>
    %83 = arith.maximumf %67, %82 : vector<2x256xf32>
    %cst_19 = arith.constant 0xFF800000 : f32
    %84 = vector.broadcast %cst_19 : f32 to vector<2x16xf32>
    %85 = vector.extract_strided_slice %83 {offsets = [0, 16], sizes = [2, 240], strides = [1, 1]} : vector<2x256xf32> to vector<2x240xf32>
    %86 = tpu.concatenate %85, %84 in 1 : vector<2x240xf32>, vector<2x16xf32> -> vector<2x256xf32>
    %cst_20 = arith.constant 0xFF800000 : f32
    %87 = vector.broadcast %cst_20 : f32 to vector<2x16xf32>
    %88 = vector.extract_strided_slice %83 {offsets = [0, 0], sizes = [2, 240], strides = [1, 1]} : vector<2x256xf32> to vector<2x240xf32>
    %89 = tpu.concatenate %87, %88 in 1 : vector<2x16xf32>, vector<2x240xf32> -> vector<2x256xf32>
    %90 = arith.maximumf %86, %89 : vector<2x256xf32>
    %91 = arith.maximumf %83, %90 : vector<2x256xf32>
    %cst_21 = arith.constant 0xFF800000 : f32
    %92 = vector.broadcast %cst_21 : f32 to vector<2x32xf32>
    %93 = vector.extract_strided_slice %83 {offsets = [0, 32], sizes = [2, 224], strides = [1, 1]} : vector<2x256xf32> to vector<2x224xf32>
    %94 = tpu.concatenate %93, %92 in 1 : vector<2x224xf32>, vector<2x32xf32> -> vector<2x256xf32>
    %cst_22 = arith.constant 0xFF800000 : f32
    %95 = vector.broadcast %cst_22 : f32 to vector<2x32xf32>
    %96 = vector.extract_strided_slice %83 {offsets = [0, 0], sizes = [2, 224], strides = [1, 1]} : vector<2x256xf32> to vector<2x224xf32>
    %97 = tpu.concatenate %95, %96 in 1 : vector<2x32xf32>, vector<2x224xf32> -> vector<2x256xf32>
    %98 = arith.maximumf %94, %97 : vector<2x256xf32>
    %99 = arith.maximumf %91, %98 : vector<2x256xf32>
    %100 = tpu.iota {dimensions = array<i32: 1>} : vector<2x256xi32>
    %c16_i32_23 = arith.constant 16 : i32
    %c0_i32_24 = arith.constant 0 : i32
    %101 = arith.cmpi eq, %c16_i32_23, %c0_i32_24 : i32
    %c1_i32_25 = arith.constant 1 : i32
    %102 = arith.select %101, %c1_i32_25, %c16_i32_23 : i32
    %103 = vector.broadcast %102 : i32 to vector<2x256xi32>
    %104 = arith.remsi %100, %103 : vector<2x256xi32>
    %c0_i32_26 = arith.constant 0 : i32
    %105 = vector.broadcast %c0_i32_26 : i32 to vector<2x256xi32>
    %106 = arith.cmpi ne, %104, %105 : vector<2x256xi32>
    %c0_i32_27 = arith.constant 0 : i32
    %107 = vector.broadcast %c0_i32_27 : i32 to vector<2x256xi32>
    %108 = arith.cmpi slt, %104, %107 : vector<2x256xi32>
    %c0_i32_28 = arith.constant 0 : i32
    %109 = arith.cmpi slt, %102, %c0_i32_28 : i32
    %110 = vector.broadcast %109 : i1 to vector<2x256xi1>
    %111 = vector.broadcast %110 : vector<2x256xi1> to vector<2x256xi1>
    %112 = arith.xori %108, %111 : vector<2x256xi1>
    %113 = arith.andi %112, %106 : vector<2x256xi1>
    %114 = vector.broadcast %102 : i32 to vector<2x256xi32>
    %115 = arith.addi %104, %114 : vector<2x256xi32>
    %116 = arith.select %113, %115, %104 : vector<2x256xi1>, vector<2x256xi32>
    %c15_i32_29 = arith.constant 15 : i32
    %117 = vector.broadcast %c15_i32_29 : i32 to vector<2x256xi32>
    %118 = arith.cmpi slt, %116, %117 : vector<2x256xi32>
    %cst_30 = arith.constant 0xFF800000 : f32
    %119 = vector.broadcast %cst_30 : f32 to vector<2x1xf32>
    %120 = vector.extract_strided_slice %34 {offsets = [0, 1], sizes = [2, 255], strides = [1, 1]} : vector<2x256xf32> to vector<2x255xf32>
    %121 = tpu.concatenate %120, %119 in 1 : vector<2x255xf32>, vector<2x1xf32> -> vector<2x256xf32>
    %cst_31 = arith.constant 0xFF800000 : f32
    %122 = vector.broadcast %cst_31 : f32 to vector<2x256xf32>
    %123 = arith.select %118, %121, %122 : vector<2x256xi1>, vector<2x256xf32>
    %c1_i32_32 = arith.constant 1 : i32
    %124 = vector.broadcast %c1_i32_32 : i32 to vector<2x256xi32>
    %125 = arith.cmpi sge, %116, %124 : vector<2x256xi32>
    %cst_33 = arith.constant 0xFF800000 : f32
    %126 = vector.broadcast %cst_33 : f32 to vector<2x1xf32>
    %127 = vector.extract_strided_slice %34 {offsets = [0, 0], sizes = [2, 255], strides = [1, 1]} : vector<2x256xf32> to vector<2x255xf32>
    %128 = tpu.concatenate %126, %127 in 1 : vector<2x1xf32>, vector<2x255xf32> -> vector<2x256xf32>
    %cst_34 = arith.constant 0xFF800000 : f32
    %129 = vector.broadcast %cst_34 : f32 to vector<2x256xf32>
    %130 = arith.select %125, %128, %129 : vector<2x256xi1>, vector<2x256xf32>
    %131 = arith.maximumf %123, %130 : vector<2x256xf32>
    %132 = arith.maximumf %34, %131 : vector<2x256xf32>
    %c14_i32_35 = arith.constant 14 : i32
    %133 = vector.broadcast %c14_i32_35 : i32 to vector<2x256xi32>
    %134 = arith.cmpi slt, %116, %133 : vector<2x256xi32>
    %cst_36 = arith.constant 0xFF800000 : f32
    %135 = vector.broadcast %cst_36 : f32 to vector<2x2xf32>
    %136 = vector.extract_strided_slice %34 {offsets = [0, 2], sizes = [2, 254], strides = [1, 1]} : vector<2x256xf32> to vector<2x254xf32>
    %137 = tpu.concatenate %136, %135 in 1 : vector<2x254xf32>, vector<2x2xf32> -> vector<2x256xf32>
    %cst_37 = arith.constant 0xFF800000 : f32
    %138 = vector.broadcast %cst_37 : f32 to vector<2x256xf32>
    %139 = arith.select %134, %137, %138 : vector<2x256xi1>, vector<2x256xf32>
    %c2_i32_38 = arith.constant 2 : i32
    %140 = vector.broadcast %c2_i32_38 : i32 to vector<2x256xi32>
    %141 = arith.cmpi sge, %116, %140 : vector<2x256xi32>
    %cst_39 = arith.constant 0xFF800000 : f32
    %142 = vector.broadcast %cst_39 : f32 to vector<2x2xf32>
    %143 = vector.extract_strided_slice %34 {offsets = [0, 0], sizes = [2, 254], strides = [1, 1]} : vector<2x256xf32> to vector<2x254xf32>
    %144 = tpu.concatenate %142, %143 in 1 : vector<2x2xf32>, vector<2x254xf32> -> vector<2x256xf32>
    %cst_40 = arith.constant 0xFF800000 : f32
    %145 = vector.broadcast %cst_40 : f32 to vector<2x256xf32>
    %146 = arith.select %141, %144, %145 : vector<2x256xi1>, vector<2x256xf32>
    %147 = arith.maximumf %139, %146 : vector<2x256xf32>
    %148 = arith.maximumf %132, %147 : vector<2x256xf32>
    %c13_i32 = arith.constant 13 : i32
    %149 = vector.broadcast %c13_i32 : i32 to vector<2x256xi32>
    %150 = arith.cmpi slt, %116, %149 : vector<2x256xi32>
    %cst_41 = arith.constant 0xFF800000 : f32
    %151 = vector.broadcast %cst_41 : f32 to vector<2x3xf32>
    %152 = vector.extract_strided_slice %34 {offsets = [0, 3], sizes = [2, 253], strides = [1, 1]} : vector<2x256xf32> to vector<2x253xf32>
    %153 = tpu.concatenate %152, %151 in 1 : vector<2x253xf32>, vector<2x3xf32> -> vector<2x256xf32>
    %cst_42 = arith.constant 0xFF800000 : f32
    %154 = vector.broadcast %cst_42 : f32 to vector<2x256xf32>
    %155 = arith.select %150, %153, %154 : vector<2x256xi1>, vector<2x256xf32>
    %c3_i32 = arith.constant 3 : i32
    %156 = vector.broadcast %c3_i32 : i32 to vector<2x256xi32>
    %157 = arith.cmpi sge, %116, %156 : vector<2x256xi32>
    %cst_43 = arith.constant 0xFF800000 : f32
    %158 = vector.broadcast %cst_43 : f32 to vector<2x3xf32>
    %159 = vector.extract_strided_slice %34 {offsets = [0, 0], sizes = [2, 253], strides = [1, 1]} : vector<2x256xf32> to vector<2x253xf32>
    %160 = tpu.concatenate %158, %159 in 1 : vector<2x3xf32>, vector<2x253xf32> -> vector<2x256xf32>
    %cst_44 = arith.constant 0xFF800000 : f32
    %161 = vector.broadcast %cst_44 : f32 to vector<2x256xf32>
    %162 = arith.select %157, %160, %161 : vector<2x256xi1>, vector<2x256xf32>
    %163 = arith.maximumf %155, %162 : vector<2x256xf32>
    %164 = arith.maximumf %148, %163 : vector<2x256xf32>
    %c12_i32 = arith.constant 12 : i32
    %165 = vector.broadcast %c12_i32 : i32 to vector<2x256xi32>
    %166 = arith.cmpi slt, %116, %165 : vector<2x256xi32>
    %cst_45 = arith.constant 0xFF800000 : f32
    %167 = vector.broadcast %cst_45 : f32 to vector<2x4xf32>
    %168 = vector.extract_strided_slice %34 {offsets = [0, 4], sizes = [2, 252], strides = [1, 1]} : vector<2x256xf32> to vector<2x252xf32>
    %169 = tpu.concatenate %168, %167 in 1 : vector<2x252xf32>, vector<2x4xf32> -> vector<2x256xf32>
    %cst_46 = arith.constant 0xFF800000 : f32
    %170 = vector.broadcast %cst_46 : f32 to vector<2x256xf32>
    %171 = arith.select %166, %169, %170 : vector<2x256xi1>, vector<2x256xf32>
    %c4_i32 = arith.constant 4 : i32
    %172 = vector.broadcast %c4_i32 : i32 to vector<2x256xi32>
    %173 = arith.cmpi sge, %116, %172 : vector<2x256xi32>
    %cst_47 = arith.constant 0xFF800000 : f32
    %174 = vector.broadcast %cst_47 : f32 to vector<2x4xf32>
    %175 = vector.extract_strided_slice %34 {offsets = [0, 0], sizes = [2, 252], strides = [1, 1]} : vector<2x256xf32> to vector<2x252xf32>
    %176 = tpu.concatenate %174, %175 in 1 : vector<2x4xf32>, vector<2x252xf32> -> vector<2x256xf32>
    %cst_48 = arith.constant 0xFF800000 : f32
    %177 = vector.broadcast %cst_48 : f32 to vector<2x256xf32>
    %178 = arith.select %173, %176, %177 : vector<2x256xi1>, vector<2x256xf32>
    %179 = arith.maximumf %171, %178 : vector<2x256xf32>
    %180 = arith.maximumf %164, %179 : vector<2x256xf32>
    %cst_49 = arith.constant 0xFF800000 : f32
    %181 = vector.broadcast %cst_49 : f32 to vector<2x16xf32>
    %182 = vector.extract_strided_slice %180 {offsets = [0, 16], sizes = [2, 240], strides = [1, 1]} : vector<2x256xf32> to vector<2x240xf32>
    %183 = tpu.concatenate %182, %181 in 1 : vector<2x240xf32>, vector<2x16xf32> -> vector<2x256xf32>
    %cst_50 = arith.constant 0xFF800000 : f32
    %184 = vector.broadcast %cst_50 : f32 to vector<2x16xf32>
    %185 = vector.extract_strided_slice %180 {offsets = [0, 0], sizes = [2, 240], strides = [1, 1]} : vector<2x256xf32> to vector<2x240xf32>
    %186 = tpu.concatenate %184, %185 in 1 : vector<2x16xf32>, vector<2x240xf32> -> vector<2x256xf32>
    %187 = arith.maximumf %183, %186 : vector<2x256xf32>
    %188 = arith.maximumf %180, %187 : vector<2x256xf32>
    %cst_51 = arith.constant 0xFF800000 : f32
    %189 = vector.broadcast %cst_51 : f32 to vector<2x32xf32>
    %190 = vector.extract_strided_slice %180 {offsets = [0, 32], sizes = [2, 224], strides = [1, 1]} : vector<2x256xf32> to vector<2x224xf32>
    %191 = tpu.concatenate %190, %189 in 1 : vector<2x224xf32>, vector<2x32xf32> -> vector<2x256xf32>
    %cst_52 = arith.constant 0xFF800000 : f32
    %192 = vector.broadcast %cst_52 : f32 to vector<2x32xf32>
    %193 = vector.extract_strided_slice %180 {offsets = [0, 0], sizes = [2, 224], strides = [1, 1]} : vector<2x256xf32> to vector<2x224xf32>
    %194 = tpu.concatenate %192, %193 in 1 : vector<2x32xf32>, vector<2x224xf32> -> vector<2x256xf32>
    %195 = arith.maximumf %191, %194 : vector<2x256xf32>
    %196 = arith.maximumf %188, %195 : vector<2x256xf32>
    %cst_53 = arith.constant 0xFF800000 : f32
    %197 = vector.broadcast %cst_53 : f32 to vector<2x48xf32>
    %198 = vector.extract_strided_slice %180 {offsets = [0, 48], sizes = [2, 208], strides = [1, 1]} : vector<2x256xf32> to vector<2x208xf32>
    %199 = tpu.concatenate %198, %197 in 1 : vector<2x208xf32>, vector<2x48xf32> -> vector<2x256xf32>
    %cst_54 = arith.constant 0xFF800000 : f32
    %200 = vector.broadcast %cst_54 : f32 to vector<2x48xf32>
    %201 = vector.extract_strided_slice %180 {offsets = [0, 0], sizes = [2, 208], strides = [1, 1]} : vector<2x256xf32> to vector<2x208xf32>
    %202 = tpu.concatenate %200, %201 in 1 : vector<2x48xf32>, vector<2x208xf32> -> vector<2x256xf32>
    %203 = arith.maximumf %199, %202 : vector<2x256xf32>
    %204 = arith.maximumf %196, %203 : vector<2x256xf32>
    %cst_55 = arith.constant 0xFF800000 : f32
    %205 = vector.broadcast %cst_55 : f32 to vector<2x64xf32>
    %206 = vector.extract_strided_slice %180 {offsets = [0, 64], sizes = [2, 192], strides = [1, 1]} : vector<2x256xf32> to vector<2x192xf32>
    %207 = tpu.concatenate %206, %205 in 1 : vector<2x192xf32>, vector<2x64xf32> -> vector<2x256xf32>
    %cst_56 = arith.constant 0xFF800000 : f32
    %208 = vector.broadcast %cst_56 : f32 to vector<2x64xf32>
    %209 = vector.extract_strided_slice %180 {offsets = [0, 0], sizes = [2, 192], strides = [1, 1]} : vector<2x256xf32> to vector<2x192xf32>
    %210 = tpu.concatenate %208, %209 in 1 : vector<2x64xf32>, vector<2x192xf32> -> vector<2x256xf32>
    %211 = arith.maximumf %207, %210 : vector<2x256xf32>
    %212 = arith.maximumf %204, %211 : vector<2x256xf32>
    %213 = tpu.iota {dimensions = array<i32: 1>} : vector<2x256xi32>
    %c16_i32_57 = arith.constant 16 : i32
    %c0_i32_58 = arith.constant 0 : i32
    %214 = arith.cmpi eq, %c16_i32_57, %c0_i32_58 : i32
    %c1_i32_59 = arith.constant 1 : i32
    %215 = arith.select %214, %c1_i32_59, %c16_i32_57 : i32
    %216 = vector.broadcast %215 : i32 to vector<2x256xi32>
    %217 = arith.remsi %213, %216 : vector<2x256xi32>
    %c0_i32_60 = arith.constant 0 : i32
    %218 = vector.broadcast %c0_i32_60 : i32 to vector<2x256xi32>
    %219 = arith.cmpi ne, %217, %218 : vector<2x256xi32>
    %c0_i32_61 = arith.constant 0 : i32
    %220 = vector.broadcast %c0_i32_61 : i32 to vector<2x256xi32>
    %221 = arith.cmpi slt, %217, %220 : vector<2x256xi32>
    %c0_i32_62 = arith.constant 0 : i32
    %222 = arith.cmpi slt, %215, %c0_i32_62 : i32
    %223 = vector.broadcast %222 : i1 to vector<2x256xi1>
    %224 = vector.broadcast %223 : vector<2x256xi1> to vector<2x256xi1>
    %225 = arith.xori %221, %224 : vector<2x256xi1>
    %226 = arith.andi %225, %219 : vector<2x256xi1>
    %227 = vector.broadcast %215 : i32 to vector<2x256xi32>
    %228 = arith.addi %217, %227 : vector<2x256xi32>
    %229 = arith.select %226, %228, %217 : vector<2x256xi1>, vector<2x256xi32>
    %c15_i32_63 = arith.constant 15 : i32
    %230 = vector.broadcast %c15_i32_63 : i32 to vector<2x256xi32>
    %231 = arith.cmpi slt, %229, %230 : vector<2x256xi32>
    %cst_64 = arith.constant 0xFF800000 : f32
    %232 = vector.broadcast %cst_64 : f32 to vector<2x1xf32>
    %233 = vector.extract_strided_slice %34 {offsets = [0, 1], sizes = [2, 255], strides = [1, 1]} : vector<2x256xf32> to vector<2x255xf32>
    %234 = tpu.concatenate %233, %232 in 1 : vector<2x255xf32>, vector<2x1xf32> -> vector<2x256xf32>
    %cst_65 = arith.constant 0xFF800000 : f32
    %235 = vector.broadcast %cst_65 : f32 to vector<2x256xf32>
    %236 = arith.select %231, %234, %235 : vector<2x256xi1>, vector<2x256xf32>
    %c1_i32_66 = arith.constant 1 : i32
    %237 = vector.broadcast %c1_i32_66 : i32 to vector<2x256xi32>
    %238 = arith.cmpi sge, %229, %237 : vector<2x256xi32>
    %cst_67 = arith.constant 0xFF800000 : f32
    %239 = vector.broadcast %cst_67 : f32 to vector<2x1xf32>
    %240 = vector.extract_strided_slice %34 {offsets = [0, 0], sizes = [2, 255], strides = [1, 1]} : vector<2x256xf32> to vector<2x255xf32>
    %241 = tpu.concatenate %239, %240 in 1 : vector<2x1xf32>, vector<2x255xf32> -> vector<2x256xf32>
    %cst_68 = arith.constant 0xFF800000 : f32
    %242 = vector.broadcast %cst_68 : f32 to vector<2x256xf32>
    %243 = arith.select %238, %241, %242 : vector<2x256xi1>, vector<2x256xf32>
    %244 = arith.maximumf %236, %243 : vector<2x256xf32>
    %245 = arith.maximumf %34, %244 : vector<2x256xf32>
    %c14_i32_69 = arith.constant 14 : i32
    %246 = vector.broadcast %c14_i32_69 : i32 to vector<2x256xi32>
    %247 = arith.cmpi slt, %229, %246 : vector<2x256xi32>
    %cst_70 = arith.constant 0xFF800000 : f32
    %248 = vector.broadcast %cst_70 : f32 to vector<2x2xf32>
    %249 = vector.extract_strided_slice %34 {offsets = [0, 2], sizes = [2, 254], strides = [1, 1]} : vector<2x256xf32> to vector<2x254xf32>
    %250 = tpu.concatenate %249, %248 in 1 : vector<2x254xf32>, vector<2x2xf32> -> vector<2x256xf32>
    %cst_71 = arith.constant 0xFF800000 : f32
    %251 = vector.broadcast %cst_71 : f32 to vector<2x256xf32>
    %252 = arith.select %247, %250, %251 : vector<2x256xi1>, vector<2x256xf32>
    %c2_i32_72 = arith.constant 2 : i32
    %253 = vector.broadcast %c2_i32_72 : i32 to vector<2x256xi32>
    %254 = arith.cmpi sge, %229, %253 : vector<2x256xi32>
    %cst_73 = arith.constant 0xFF800000 : f32
    %255 = vector.broadcast %cst_73 : f32 to vector<2x2xf32>
    %256 = vector.extract_strided_slice %34 {offsets = [0, 0], sizes = [2, 254], strides = [1, 1]} : vector<2x256xf32> to vector<2x254xf32>
    %257 = tpu.concatenate %255, %256 in 1 : vector<2x2xf32>, vector<2x254xf32> -> vector<2x256xf32>
    %cst_74 = arith.constant 0xFF800000 : f32
    %258 = vector.broadcast %cst_74 : f32 to vector<2x256xf32>
    %259 = arith.select %254, %257, %258 : vector<2x256xi1>, vector<2x256xf32>
    %260 = arith.maximumf %252, %259 : vector<2x256xf32>
    %261 = arith.maximumf %245, %260 : vector<2x256xf32>
    %c13_i32_75 = arith.constant 13 : i32
    %262 = vector.broadcast %c13_i32_75 : i32 to vector<2x256xi32>
    %263 = arith.cmpi slt, %229, %262 : vector<2x256xi32>
    %cst_76 = arith.constant 0xFF800000 : f32
    %264 = vector.broadcast %cst_76 : f32 to vector<2x3xf32>
    %265 = vector.extract_strided_slice %34 {offsets = [0, 3], sizes = [2, 253], strides = [1, 1]} : vector<2x256xf32> to vector<2x253xf32>
    %266 = tpu.concatenate %265, %264 in 1 : vector<2x253xf32>, vector<2x3xf32> -> vector<2x256xf32>
    %cst_77 = arith.constant 0xFF800000 : f32
    %267 = vector.broadcast %cst_77 : f32 to vector<2x256xf32>
    %268 = arith.select %263, %266, %267 : vector<2x256xi1>, vector<2x256xf32>
    %c3_i32_78 = arith.constant 3 : i32
    %269 = vector.broadcast %c3_i32_78 : i32 to vector<2x256xi32>
    %270 = arith.cmpi sge, %229, %269 : vector<2x256xi32>
    %cst_79 = arith.constant 0xFF800000 : f32
    %271 = vector.broadcast %cst_79 : f32 to vector<2x3xf32>
    %272 = vector.extract_strided_slice %34 {offsets = [0, 0], sizes = [2, 253], strides = [1, 1]} : vector<2x256xf32> to vector<2x253xf32>
    %273 = tpu.concatenate %271, %272 in 1 : vector<2x3xf32>, vector<2x253xf32> -> vector<2x256xf32>
    %cst_80 = arith.constant 0xFF800000 : f32
    %274 = vector.broadcast %cst_80 : f32 to vector<2x256xf32>
    %275 = arith.select %270, %273, %274 : vector<2x256xi1>, vector<2x256xf32>
    %276 = arith.maximumf %268, %275 : vector<2x256xf32>
    %277 = arith.maximumf %261, %276 : vector<2x256xf32>
    %c12_i32_81 = arith.constant 12 : i32
    %278 = vector.broadcast %c12_i32_81 : i32 to vector<2x256xi32>
    %279 = arith.cmpi slt, %229, %278 : vector<2x256xi32>
    %cst_82 = arith.constant 0xFF800000 : f32
    %280 = vector.broadcast %cst_82 : f32 to vector<2x4xf32>
    %281 = vector.extract_strided_slice %34 {offsets = [0, 4], sizes = [2, 252], strides = [1, 1]} : vector<2x256xf32> to vector<2x252xf32>
    %282 = tpu.concatenate %281, %280 in 1 : vector<2x252xf32>, vector<2x4xf32> -> vector<2x256xf32>
    %cst_83 = arith.constant 0xFF800000 : f32
    %283 = vector.broadcast %cst_83 : f32 to vector<2x256xf32>
    %284 = arith.select %279, %282, %283 : vector<2x256xi1>, vector<2x256xf32>
    %c4_i32_84 = arith.constant 4 : i32
    %285 = vector.broadcast %c4_i32_84 : i32 to vector<2x256xi32>
    %286 = arith.cmpi sge, %229, %285 : vector<2x256xi32>
    %cst_85 = arith.constant 0xFF800000 : f32
    %287 = vector.broadcast %cst_85 : f32 to vector<2x4xf32>
    %288 = vector.extract_strided_slice %34 {offsets = [0, 0], sizes = [2, 252], strides = [1, 1]} : vector<2x256xf32> to vector<2x252xf32>
    %289 = tpu.concatenate %287, %288 in 1 : vector<2x4xf32>, vector<2x252xf32> -> vector<2x256xf32>
    %cst_86 = arith.constant 0xFF800000 : f32
    %290 = vector.broadcast %cst_86 : f32 to vector<2x256xf32>
    %291 = arith.select %286, %289, %290 : vector<2x256xi1>, vector<2x256xf32>
    %292 = arith.maximumf %284, %291 : vector<2x256xf32>
    %293 = arith.maximumf %277, %292 : vector<2x256xf32>
    %c11_i32 = arith.constant 11 : i32
    %294 = vector.broadcast %c11_i32 : i32 to vector<2x256xi32>
    %295 = arith.cmpi slt, %229, %294 : vector<2x256xi32>
    %cst_87 = arith.constant 0xFF800000 : f32
    %296 = vector.broadcast %cst_87 : f32 to vector<2x5xf32>
    %297 = vector.extract_strided_slice %34 {offsets = [0, 5], sizes = [2, 251], strides = [1, 1]} : vector<2x256xf32> to vector<2x251xf32>
    %298 = tpu.concatenate %297, %296 in 1 : vector<2x251xf32>, vector<2x5xf32> -> vector<2x256xf32>
    %cst_88 = arith.constant 0xFF800000 : f32
    %299 = vector.broadcast %cst_88 : f32 to vector<2x256xf32>
    %300 = arith.select %295, %298, %299 : vector<2x256xi1>, vector<2x256xf32>
    %c5_i32 = arith.constant 5 : i32
    %301 = vector.broadcast %c5_i32 : i32 to vector<2x256xi32>
    %302 = arith.cmpi sge, %229, %301 : vector<2x256xi32>
    %cst_89 = arith.constant 0xFF800000 : f32
    %303 = vector.broadcast %cst_89 : f32 to vector<2x5xf32>
    %304 = vector.extract_strided_slice %34 {offsets = [0, 0], sizes = [2, 251], strides = [1, 1]} : vector<2x256xf32> to vector<2x251xf32>
    %305 = tpu.concatenate %303, %304 in 1 : vector<2x5xf32>, vector<2x251xf32> -> vector<2x256xf32>
    %cst_90 = arith.constant 0xFF800000 : f32
    %306 = vector.broadcast %cst_90 : f32 to vector<2x256xf32>
    %307 = arith.select %302, %305, %306 : vector<2x256xi1>, vector<2x256xf32>
    %308 = arith.maximumf %300, %307 : vector<2x256xf32>
    %309 = arith.maximumf %293, %308 : vector<2x256xf32>
    %c10_i32 = arith.constant 10 : i32
    %310 = vector.broadcast %c10_i32 : i32 to vector<2x256xi32>
    %311 = arith.cmpi slt, %229, %310 : vector<2x256xi32>
    %cst_91 = arith.constant 0xFF800000 : f32
    %312 = vector.broadcast %cst_91 : f32 to vector<2x6xf32>
    %313 = vector.extract_strided_slice %34 {offsets = [0, 6], sizes = [2, 250], strides = [1, 1]} : vector<2x256xf32> to vector<2x250xf32>
    %314 = tpu.concatenate %313, %312 in 1 : vector<2x250xf32>, vector<2x6xf32> -> vector<2x256xf32>
    %cst_92 = arith.constant 0xFF800000 : f32
    %315 = vector.broadcast %cst_92 : f32 to vector<2x256xf32>
    %316 = arith.select %311, %314, %315 : vector<2x256xi1>, vector<2x256xf32>
    %c6_i32 = arith.constant 6 : i32
    %317 = vector.broadcast %c6_i32 : i32 to vector<2x256xi32>
    %318 = arith.cmpi sge, %229, %317 : vector<2x256xi32>
    %cst_93 = arith.constant 0xFF800000 : f32
    %319 = vector.broadcast %cst_93 : f32 to vector<2x6xf32>
    %320 = vector.extract_strided_slice %34 {offsets = [0, 0], sizes = [2, 250], strides = [1, 1]} : vector<2x256xf32> to vector<2x250xf32>
    %321 = tpu.concatenate %319, %320 in 1 : vector<2x6xf32>, vector<2x250xf32> -> vector<2x256xf32>
    %cst_94 = arith.constant 0xFF800000 : f32
    %322 = vector.broadcast %cst_94 : f32 to vector<2x256xf32>
    %323 = arith.select %318, %321, %322 : vector<2x256xi1>, vector<2x256xf32>
    %324 = arith.maximumf %316, %323 : vector<2x256xf32>
    %325 = arith.maximumf %309, %324 : vector<2x256xf32>
    %cst_95 = arith.constant 0xFF800000 : f32
    %326 = vector.broadcast %cst_95 : f32 to vector<2x16xf32>
    %327 = vector.extract_strided_slice %325 {offsets = [0, 16], sizes = [2, 240], strides = [1, 1]} : vector<2x256xf32> to vector<2x240xf32>
    %328 = tpu.concatenate %327, %326 in 1 : vector<2x240xf32>, vector<2x16xf32> -> vector<2x256xf32>
    %cst_96 = arith.constant 0xFF800000 : f32
    %329 = vector.broadcast %cst_96 : f32 to vector<2x16xf32>
    %330 = vector.extract_strided_slice %325 {offsets = [0, 0], sizes = [2, 240], strides = [1, 1]} : vector<2x256xf32> to vector<2x240xf32>
    %331 = tpu.concatenate %329, %330 in 1 : vector<2x16xf32>, vector<2x240xf32> -> vector<2x256xf32>
    %332 = arith.maximumf %328, %331 : vector<2x256xf32>
    %333 = arith.maximumf %325, %332 : vector<2x256xf32>
    %cst_97 = arith.constant 0xFF800000 : f32
    %334 = vector.broadcast %cst_97 : f32 to vector<2x32xf32>
    %335 = vector.extract_strided_slice %325 {offsets = [0, 32], sizes = [2, 224], strides = [1, 1]} : vector<2x256xf32> to vector<2x224xf32>
    %336 = tpu.concatenate %335, %334 in 1 : vector<2x224xf32>, vector<2x32xf32> -> vector<2x256xf32>
    %cst_98 = arith.constant 0xFF800000 : f32
    %337 = vector.broadcast %cst_98 : f32 to vector<2x32xf32>
    %338 = vector.extract_strided_slice %325 {offsets = [0, 0], sizes = [2, 224], strides = [1, 1]} : vector<2x256xf32> to vector<2x224xf32>
    %339 = tpu.concatenate %337, %338 in 1 : vector<2x32xf32>, vector<2x224xf32> -> vector<2x256xf32>
    %340 = arith.maximumf %336, %339 : vector<2x256xf32>
    %341 = arith.maximumf %333, %340 : vector<2x256xf32>
    %cst_99 = arith.constant 0xFF800000 : f32
    %342 = vector.broadcast %cst_99 : f32 to vector<2x48xf32>
    %343 = vector.extract_strided_slice %325 {offsets = [0, 48], sizes = [2, 208], strides = [1, 1]} : vector<2x256xf32> to vector<2x208xf32>
    %344 = tpu.concatenate %343, %342 in 1 : vector<2x208xf32>, vector<2x48xf32> -> vector<2x256xf32>
    %cst_100 = arith.constant 0xFF800000 : f32
    %345 = vector.broadcast %cst_100 : f32 to vector<2x48xf32>
    %346 = vector.extract_strided_slice %325 {offsets = [0, 0], sizes = [2, 208], strides = [1, 1]} : vector<2x256xf32> to vector<2x208xf32>
    %347 = tpu.concatenate %345, %346 in 1 : vector<2x48xf32>, vector<2x208xf32> -> vector<2x256xf32>
    %348 = arith.maximumf %344, %347 : vector<2x256xf32>
    %349 = arith.maximumf %341, %348 : vector<2x256xf32>
    %cst_101 = arith.constant 0xFF800000 : f32
    %350 = vector.broadcast %cst_101 : f32 to vector<2x64xf32>
    %351 = vector.extract_strided_slice %325 {offsets = [0, 64], sizes = [2, 192], strides = [1, 1]} : vector<2x256xf32> to vector<2x192xf32>
    %352 = tpu.concatenate %351, %350 in 1 : vector<2x192xf32>, vector<2x64xf32> -> vector<2x256xf32>
    %cst_102 = arith.constant 0xFF800000 : f32
    %353 = vector.broadcast %cst_102 : f32 to vector<2x64xf32>
    %354 = vector.extract_strided_slice %325 {offsets = [0, 0], sizes = [2, 192], strides = [1, 1]} : vector<2x256xf32> to vector<2x192xf32>
    %355 = tpu.concatenate %353, %354 in 1 : vector<2x64xf32>, vector<2x192xf32> -> vector<2x256xf32>
    %356 = arith.maximumf %352, %355 : vector<2x256xf32>
    %357 = arith.maximumf %349, %356 : vector<2x256xf32>
    %cst_103 = arith.constant 0xFF800000 : f32
    %358 = vector.broadcast %cst_103 : f32 to vector<2x80xf32>
    %359 = vector.extract_strided_slice %325 {offsets = [0, 80], sizes = [2, 176], strides = [1, 1]} : vector<2x256xf32> to vector<2x176xf32>
    %360 = tpu.concatenate %359, %358 in 1 : vector<2x176xf32>, vector<2x80xf32> -> vector<2x256xf32>
    %cst_104 = arith.constant 0xFF800000 : f32
    %361 = vector.broadcast %cst_104 : f32 to vector<2x80xf32>
    %362 = vector.extract_strided_slice %325 {offsets = [0, 0], sizes = [2, 176], strides = [1, 1]} : vector<2x256xf32> to vector<2x176xf32>
    %363 = tpu.concatenate %361, %362 in 1 : vector<2x80xf32>, vector<2x176xf32> -> vector<2x256xf32>
    %364 = arith.maximumf %360, %363 : vector<2x256xf32>
    %365 = arith.maximumf %357, %364 : vector<2x256xf32>
    %cst_105 = arith.constant 0xFF800000 : f32
    %366 = vector.broadcast %cst_105 : f32 to vector<2x96xf32>
    %367 = vector.extract_strided_slice %325 {offsets = [0, 96], sizes = [2, 160], strides = [1, 1]} : vector<2x256xf32> to vector<2x160xf32>
    %368 = tpu.concatenate %367, %366 in 1 : vector<2x160xf32>, vector<2x96xf32> -> vector<2x256xf32>
    %cst_106 = arith.constant 0xFF800000 : f32
    %369 = vector.broadcast %cst_106 : f32 to vector<2x96xf32>
    %370 = vector.extract_strided_slice %325 {offsets = [0, 0], sizes = [2, 160], strides = [1, 1]} : vector<2x256xf32> to vector<2x160xf32>
    %371 = tpu.concatenate %369, %370 in 1 : vector<2x96xf32>, vector<2x160xf32> -> vector<2x256xf32>
    %372 = arith.maximumf %368, %371 : vector<2x256xf32>
    %373 = arith.maximumf %365, %372 : vector<2x256xf32>
    %c0_107 = arith.constant 0 : index
    %c0_108 = arith.constant 0 : index
    %c0_109 = arith.constant 0 : index
    %374 = vector.load %arg4[%c0_107, %c0_108, %c0_109] : memref<4x4x2xf32, #tpu.memory_space<vmem>>, vector<1x4x2xf32>
    %375 = vector.shape_cast %374 : vector<1x4x2xf32> to vector<4x2xf32>
    %376 = vector.extract_strided_slice %375 {offsets = [0, 0], sizes = [4, 1], strides = [1, 1]} : vector<4x2xf32> to vector<4x1xf32>
    %377 = vector.extract_strided_slice %34 {offsets = [0, 0], sizes = [1, 256], strides = [1, 1]} : vector<2x256xf32> to vector<1x256xf32>
    %378 = vector.broadcast %376 : vector<4x1xf32> to vector<4x256xf32>
    %379 = vector.broadcast %377 : vector<1x256xf32> to vector<4x256xf32>
    %380 = arith.mulf %378, %379 : vector<4x256xf32>
    %381 = vector.extract_strided_slice %375 {offsets = [0, 1], sizes = [4, 1], strides = [1, 1]} : vector<4x2xf32> to vector<4x1xf32>
    %382 = vector.extract_strided_slice %34 {offsets = [1, 0], sizes = [1, 256], strides = [1, 1]} : vector<2x256xf32> to vector<1x256xf32>
    %383 = vector.broadcast %381 : vector<4x1xf32> to vector<4x256xf32>
    %384 = vector.broadcast %382 : vector<1x256xf32> to vector<4x256xf32>
    %385 = arith.mulf %383, %384 : vector<4x256xf32>
    %386 = arith.addf %380, %385 : vector<4x256xf32>
    %c1 = arith.constant 1 : index
    %c0_110 = arith.constant 0 : index
    %c0_111 = arith.constant 0 : index
    %387 = vector.load %arg4[%c1, %c0_110, %c0_111] : memref<4x4x2xf32, #tpu.memory_space<vmem>>, vector<1x4x2xf32>
    %388 = vector.shape_cast %387 : vector<1x4x2xf32> to vector<4x2xf32>
    %389 = vector.extract_strided_slice %388 {offsets = [0, 0], sizes = [4, 1], strides = [1, 1]} : vector<4x2xf32> to vector<4x1xf32>
    %390 = vector.extract_strided_slice %99 {offsets = [0, 0], sizes = [1, 256], strides = [1, 1]} : vector<2x256xf32> to vector<1x256xf32>
    %391 = vector.broadcast %389 : vector<4x1xf32> to vector<4x256xf32>
    %392 = vector.broadcast %390 : vector<1x256xf32> to vector<4x256xf32>
    %393 = arith.mulf %391, %392 : vector<4x256xf32>
    %394 = vector.extract_strided_slice %388 {offsets = [0, 1], sizes = [4, 1], strides = [1, 1]} : vector<4x2xf32> to vector<4x1xf32>
    %395 = vector.extract_strided_slice %99 {offsets = [1, 0], sizes = [1, 256], strides = [1, 1]} : vector<2x256xf32> to vector<1x256xf32>
    %396 = vector.broadcast %394 : vector<4x1xf32> to vector<4x256xf32>
    %397 = vector.broadcast %395 : vector<1x256xf32> to vector<4x256xf32>
    %398 = arith.mulf %396, %397 : vector<4x256xf32>
    %399 = arith.addf %393, %398 : vector<4x256xf32>
    %400 = arith.addf %386, %399 : vector<4x256xf32>
    %c2 = arith.constant 2 : index
    %c0_112 = arith.constant 0 : index
    %c0_113 = arith.constant 0 : index
    %401 = vector.load %arg4[%c2, %c0_112, %c0_113] : memref<4x4x2xf32, #tpu.memory_space<vmem>>, vector<1x4x2xf32>
    %402 = vector.shape_cast %401 : vector<1x4x2xf32> to vector<4x2xf32>
    %403 = vector.extract_strided_slice %402 {offsets = [0, 0], sizes = [4, 1], strides = [1, 1]} : vector<4x2xf32> to vector<4x1xf32>
    %404 = vector.extract_strided_slice %212 {offsets = [0, 0], sizes = [1, 256], strides = [1, 1]} : vector<2x256xf32> to vector<1x256xf32>
    %405 = vector.broadcast %403 : vector<4x1xf32> to vector<4x256xf32>
    %406 = vector.broadcast %404 : vector<1x256xf32> to vector<4x256xf32>
    %407 = arith.mulf %405, %406 : vector<4x256xf32>
    %408 = vector.extract_strided_slice %402 {offsets = [0, 1], sizes = [4, 1], strides = [1, 1]} : vector<4x2xf32> to vector<4x1xf32>
    %409 = vector.extract_strided_slice %212 {offsets = [1, 0], sizes = [1, 256], strides = [1, 1]} : vector<2x256xf32> to vector<1x256xf32>
    %410 = vector.broadcast %408 : vector<4x1xf32> to vector<4x256xf32>
    %411 = vector.broadcast %409 : vector<1x256xf32> to vector<4x256xf32>
    %412 = arith.mulf %410, %411 : vector<4x256xf32>
    %413 = arith.addf %407, %412 : vector<4x256xf32>
    %414 = arith.addf %400, %413 : vector<4x256xf32>
    %c3 = arith.constant 3 : index
    %c0_114 = arith.constant 0 : index
    %c0_115 = arith.constant 0 : index
    %415 = vector.load %arg4[%c3, %c0_114, %c0_115] : memref<4x4x2xf32, #tpu.memory_space<vmem>>, vector<1x4x2xf32>
    %416 = vector.shape_cast %415 : vector<1x4x2xf32> to vector<4x2xf32>
    %417 = vector.extract_strided_slice %416 {offsets = [0, 0], sizes = [4, 1], strides = [1, 1]} : vector<4x2xf32> to vector<4x1xf32>
    %418 = vector.extract_strided_slice %373 {offsets = [0, 0], sizes = [1, 256], strides = [1, 1]} : vector<2x256xf32> to vector<1x256xf32>
    %419 = vector.broadcast %417 : vector<4x1xf32> to vector<4x256xf32>
    %420 = vector.broadcast %418 : vector<1x256xf32> to vector<4x256xf32>
    %421 = arith.mulf %419, %420 : vector<4x256xf32>
    %422 = vector.extract_strided_slice %416 {offsets = [0, 1], sizes = [4, 1], strides = [1, 1]} : vector<4x2xf32> to vector<4x1xf32>
    %423 = vector.extract_strided_slice %373 {offsets = [1, 0], sizes = [1, 256], strides = [1, 1]} : vector<2x256xf32> to vector<1x256xf32>
    %424 = vector.broadcast %422 : vector<4x1xf32> to vector<4x256xf32>
    %425 = vector.broadcast %423 : vector<1x256xf32> to vector<4x256xf32>
    %426 = arith.mulf %424, %425 : vector<4x256xf32>
    %427 = arith.addf %421, %426 : vector<4x256xf32>
    %428 = arith.addf %414, %427 : vector<4x256xf32>
    %c0_116 = arith.constant 0 : index
    %c0_117 = arith.constant 0 : index
    %429 = vector.load %arg5[%c0_116, %c0_117] : memref<4x1xf32, #tpu.memory_space<vmem>>, vector<4x1xf32>
    %430 = vector.broadcast %429 : vector<4x1xf32> to vector<4x256xf32>
    %431 = arith.addf %428, %430 : vector<4x256xf32>
    %cst_118 = arith.constant 0.000000e+00 : f32
    %432 = vector.broadcast %cst_118 : f32 to vector<4x256xf32>
    %433 = arith.subf %432, %431 : vector<4x256xf32>
    %434 = math.exp %433 : vector<4x256xf32>
    %cst_119 = arith.constant 1.000000e+00 : f32
    %435 = vector.broadcast %cst_119 : f32 to vector<4x256xf32>
    %436 = arith.addf %435, %434 : vector<4x256xf32>
    %437 = arith.divf %431, %436 : vector<4x256xf32>
    %c0_120 = arith.constant 0 : index
    %c0_121 = arith.constant 0 : index
    %c0_122 = arith.constant 0 : index
    %438 = vector.load %arg6[%c0_120, %c0_121, %c0_122] : memref<1x4x256xf32, #tpu.memory_space<vmem>>, vector<1x4x256xf32>
    %439 = vector.shape_cast %438 : vector<1x4x256xf32> to vector<4x256xf32>
    %440 = vector.shape_cast %437 : vector<4x256xf32> to vector<1x4x256xf32>
    tpu.vector_store %arg6[%c0_120, %c0_121, %c0_122], %440 {strides = array<i32>} : memref<1x4x256xf32, #tpu.memory_space<vmem>>, vector<1x4x256xf32>,
    return
  }
  func.func @transform_0(%arg0: i32) -> (i32, i32, i32) {
    %c0_i32 = arith.constant 0 : i32
    %c0_i32_0 = arith.constant 0 : i32
    %c0_i32_1 = arith.constant 0 : i32
    return %arg0, %c0_i32, %c0_i32_0 : i32, i32, i32
  }
  func.func @transform_1(%arg0: i32) -> (i32, i32) {
    %c0_i32 = arith.constant 0 : i32
    %c0_i32_0 = arith.constant 0 : i32
    %c0_i32_1 = arith.constant 0 : i32
    return %c0_i32, %c0_i32_0 : i32, i32
  }
  func.func @transform_2(%arg0: i32) -> (i32, i32) {
    %c0_i32 = arith.constant 0 : i32
    %c0_i32_0 = arith.constant 0 : i32
    %c0_i32_1 = arith.constant 0 : i32
    return %c0_i32, %c0_i32_0 : i32, i32
  }
  func.func @transform_3(%arg0: i32) -> (i32, i32, i32) {
    %c0_i32 = arith.constant 0 : i32
    %c0_i32_0 = arith.constant 0 : i32
    %c0_i32_1 = arith.constant 0 : i32
    %c0_i32_2 = arith.constant 0 : i32
    return %c0_i32, %c0_i32_0, %c0_i32_1 : i32, i32, i32
  }
  func.func @transform_4(%arg0: i32) -> (i32, i32) {
    %c0_i32 = arith.constant 0 : i32
    %c0_i32_0 = arith.constant 0 : i32
    %c0_i32_1 = arith.constant 0 : i32
    return %c0_i32, %c0_i32_0 : i32, i32
  }
  func.func @transform_5(%arg0: i32) -> (i32, i32, i32) {
    %c0_i32 = arith.constant 0 : i32
    %c0_i32_0 = arith.constant 0 : i32
    %c0_i32_1 = arith.constant 0 : i32
    return %arg0, %c0_i32, %c0_i32_0 : i32, i32, i32
  }
}

</mosaic_0001>

<llo_original>
// kernel: tpu_custom_call.1
$region0: #{tpu_custom_call.1}
  #allocation0 [shape = 'u32[]', space=smem, size = 0x4, offset = 0x4, fixed_abs, tag = 'smem constant byte address 0x4 - core index']
  #allocation1 [shape = 'u32[144,128]{1,0:T(1,128)}', space=vmem, size = 0x12000, scoped, tag = 'internal scratch']
  %s0 = inlined_call_operand.vmem [shape: f32[2,4,256], index: 0, kind: input, shape index: {}]
  %s1 = inlined_call_operand.vmem [shape: f32[2,4], index: 1, kind: input, shape index: {}]
  %s2 = inlined_call_operand.vmem [shape: f32[2,1], index: 2, kind: input, shape index: {}]
  %s3 = inlined_call_operand.vmem [shape: f32[4,4,2], index: 3, kind: input, shape index: {}]
  %s4 = inlined_call_operand.vmem [shape: f32[4,1], index: 4, kind: input, shape index: {}]
  %s5 = inlined_call_operand.hbm [shape: f32[2,4,256], index: 5, kind: output, shape index: {}]
  %s6 = sld [smem:[#allocation0]]
  $region53: #{tpu_custom_call.1} parent=0
    _
  %s8 = ssub.s32 1, %s6
  %s9 = scalar_select 0, %s8, %s6
  $region1: #{tpu_custom_call.1} parent=0
    #allocation2 [shape = 'u8[8192]{0}', space=vmem, size = 0x2000, scoped, tag = 'output window, operand 0']
    #allocation3 [shape = 's32[2]{0}', space=sflag, size = 0x8, scoped, tag = 'scoped memory for tpu_custom_call.1']
    %10 = vsyncpa [#allocation3], 0
    %s11 = scalar_lea.sflag [#allocation3], 1
    %12 = vsyncpa %s11, 0
    loop: start=0, step=1, limit=4
    $region2: #{tpu_custom_call.1} parent=1 // loop_pre_header
      _
    $region3: #{tpu_custom_call.1} parent=1 // loop_header
      %s14 = sphi 0, %s18
      %p15 = scmp.ge.s32.totalorder %s14, 4
      %s24 = sphi 0, %s26
      %s27 = sphi 0, %s24
      %s28 = sphi 0, %s27
      %s44 = sphi 0, %s28
      %s48 = sphi 0, %s48
      %s50 = sphi 0, %s48
      %s51 = sphi 0, %s50
      %s65 = sphi 0, %s51
      %s69 = sphi 0, %s69
      %s71 = sphi 0, %s69
      %s72 = sphi 0, %s71
      %s86 = sphi 0, %s72
      %s90 = sphi 0, %s90
      %s92 = sphi 0, %s90
      %s93 = sphi 0, %s92
      %s107 = sphi 0, %s93
      %s111 = sphi 0, %s111
      %s113 = sphi 0, %s111
      %s114 = sphi 0, %s113
      %s128 = sphi 0, %s114
      %s134 = sphi 0, %s136
      %s137 = sphi 0, %s134
      %s138 = sphi 0, %s137
      %s154 = sphi 0, %s138
    $region4: #{tpu_custom_call.1} parent=1 // loop_header_branch
      %17 = sbr.rel (%p15) target = $region8
    $region5: #{tpu_custom_call.1} parent=1 // loop_body
      %s19 = ssub.s32 %s14, 1
      %s20 = ssub.s32 %s14, 2
      %s21 = sadd.s32 %s14, 1
      %s22 = ssub.s32 %s14, %s21
      %p23 = scmp.eq.s32.totalorder %s22, 0
      %s25 = sadd.s32 %s24, 1
      %s26 = scalar_select %p23, %s24, %s25
      %p29 = pneg %p23
      %p30 = scmp.eq.s32.totalorder %s14, 1
      %p31 = por %p29, %p30
      %p32 = scmp.ne.s32.totalorder %s24, %s27
      %p33 = scmp.eq.s32.totalorder %s14, 0
      %p34 = por %p32, %p33
      %p35 = scmp.ne.s32.totalorder %s24, %s27
      %p36 = scmp.eq.s32.totalorder %s19, 1
      %p37 = por %p35, %p36
      %p38 = scmp.ne.s32.totalorder %s27, %s28
      %p39 = scmp.eq.s32.totalorder %s19, 0
      %p40 = por %p38, %p39
      %p41 = scmp.ne.s32.totalorder %s27, %s28
      %p42 = scmp.eq.s32.totalorder %s20, 1
      %p43 = por %p41, %p42
      %p45 = scmp.ne.s32.totalorder %s28, %s44
      %p46 = scmp.eq.s32.totalorder %s20, 0
      %p47 = por %p45, %p46
      %s49 = sadd.s32 %s48, 1
      %p52 = scmp.eq.s32.totalorder %s14, 1
      %p53 = scmp.ne.s32.totalorder %s48, %s50
      %p54 = scmp.eq.s32.totalorder %s14, 0
      %p55 = por %p53, %p54
      %p56 = scmp.ne.s32.totalorder %s48, %s50
      %p57 = scmp.eq.s32.totalorder %s19, 1
      %p58 = por %p56, %p57
      %p59 = scmp.ne.s32.totalorder %s50, %s51
      %p60 = scmp.eq.s32.totalorder %s19, 0
      %p61 = por %p59, %p60
      %p62 = scmp.ne.s32.totalorder %s50, %s51
      %p63 = scmp.eq.s32.totalorder %s20, 1
      %p64 = por %p62, %p63
      %p66 = scmp.ne.s32.totalorder %s51, %s65
      %p67 = scmp.eq.s32.totalorder %s20, 0
      %p68 = por %p66, %p67
      %s70 = sadd.s32 %s69, 1
      %p73 = scmp.eq.s32.totalorder %s14, 1
      %p74 = scmp.ne.s32.totalorder %s69, %s71
      %p75 = scmp.eq.s32.totalorder %s14, 0
      %p76 = por %p74, %p75
      %p77 = scmp.ne.s32.totalorder %s69, %s71
      %p78 = scmp.eq.s32.totalorder %s19, 1
      %p79 = por %p77, %p78
      %p80 = scmp.ne.s32.totalorder %s71, %s72
      %p81 = scmp.eq.s32.totalorder %s19, 0
      %p82 = por %p80, %p81
      %p83 = scmp.ne.s32.totalorder %s71, %s72
      %p84 = scmp.eq.s32.totalorder %s20, 1
      %p85 = por %p83, %p84
      %p87 = scmp.ne.s32.totalorder %s72, %s86
      %p88 = scmp.eq.s32.totalorder %s20, 0
      %p89 = por %p87, %p88
      %s91 = sadd.s32 %s90, 1
      %p94 = scmp.eq.s32.totalorder %s14, 1
      %p95 = scmp.ne.s32.totalorder %s90, %s92
      %p96 = scmp.eq.s32.totalorder %s14, 0
      %p97 = por %p95, %p96
      %p98 = scmp.ne.s32.totalorder %s90, %s92
      %p99 = scmp.eq.s32.totalorder %s19, 1
      %p100 = por %p98, %p99
      %p101 = scmp.ne.s32.totalorder %s92, %s93
      %p102 = scmp.eq.s32.totalorder %s19, 0
      %p103 = por %p101, %p102
      %p104 = scmp.ne.s32.totalorder %s92, %s93
      %p105 = scmp.eq.s32.totalorder %s20, 1
      %p106 = por %p104, %p105
      %p108 = scmp.ne.s32.totalorder %s93, %s107
      %p109 = scmp.eq.s32.totalorder %s20, 0
      %p110 = por %p108, %p109
      %s112 = sadd.s32 %s111, 1
      %p115 = scmp.eq.s32.totalorder %s14, 1
      %p116 = scmp.ne.s32.totalorder %s111, %s113
      %p117 = scmp.eq.s32.totalorder %s14, 0
      %p118 = por %p116, %p117
      %p119 = scmp.ne.s32.totalorder %s111, %s113
      %p120 = scmp.eq.s32.totalorder %s19, 1
      %p121 = por %p119, %p120
      %p122 = scmp.ne.s32.totalorder %s113, %s114
      %p123 = scmp.eq.s32.totalorder %s19, 0
      %p124 = por %p122, %p123
      %p125 = scmp.ne.s32.totalorder %s113, %s114
      %p126 = scmp.eq.s32.totalorder %s20, 1
      %p127 = por %p125, %p126
      %p129 = scmp.ne.s32.totalorder %s114, %s128
      %p130 = scmp.eq.s32.totalorder %s20, 0
      %p131 = por %p129, %p130
      %s132 = ssub.s32 %s14, %s21
      %p133 = scmp.eq.s32.totalorder %s132, 0
      %s135 = sadd.s32 %s134, 1
      %s136 = scalar_select %p133, %s134, %s135
      %p139 = pneg %p133
      %p140 = scmp.eq.s32.totalorder %s14, 1
      %p141 = por %p139, %p140
      %p142 = scmp.ne.s32.totalorder %s134, %s137
      %p143 = scmp.eq.s32.totalorder %s14, 0
      %p144 = por %p142, %p143
      %p145 = scmp.ne.s32.totalorder %s134, %s137
      %p146 = scmp.eq.s32.totalorder %s19, 1
      %p147 = por %p145, %p146
      %p148 = scmp.ne.s32.totalorder %s137, %s138
      %p149 = scmp.eq.s32.totalorder %s19, 0
      %p150 = por %p148, %p149
      %p151 = scmp.ne.s32.totalorder %s137, %s138
      %p152 = scmp.eq.s32.totalorder %s20, 1
      %p153 = por %p151, %p152
      %p155 = scmp.ne.s32.totalorder %s138, %s154
      %p156 = scmp.eq.s32.totalorder %s20, 0
      %p157 = por %p155, %p156
      %p158 = scmp.le.s32.totalorder 1, %s14
      %p159 = scmp.lt.s32.totalorder %s14, 3
      %p160 = pnand %p158, %p159
      %p161 = pneg %p160
      // Predicated region
      $region9: #{tpu_custom_call.1} parent=5 // pred_check
        _
      $region10: #{tpu_custom_call.1} parent=5 // pred_check_branch
        %163 = sbr.rel (%p160) target = $region12
      $region11: #{tpu_custom_call.1} parent=5 // pred_region
        %s164 = ssub.s32 %s14, 1
        // Predicated region
        $region13: #{tpu_custom_call.1} parent=11 // pred_check
          %p165 = pneg %p61
        $region14: #{tpu_custom_call.1} parent=11 // pred_check_branch
          %167 = sbr.rel (%p165) target = $region16
        $region15: #{tpu_custom_call.1} parent=11 // pred_region
          _
        $region16: #{tpu_custom_call.1} parent=11 // pred_fallthru
          _
        // Predicated region
        $region17: #{tpu_custom_call.1} parent=11 // pred_check
          %p168 = pneg %p82
        $region18: #{tpu_custom_call.1} parent=11 // pred_check_branch
          %170 = sbr.rel (%p168) target = $region20
        $region19: #{tpu_custom_call.1} parent=11 // pred_region
          _
        $region20: #{tpu_custom_call.1} parent=11 // pred_fallthru
          _
        // Predicated region
        $region21: #{tpu_custom_call.1} parent=11 // pred_check
          %p171 = pneg %p103
        $region22: #{tpu_custom_call.1} parent=11 // pred_check_branch
          %173 = sbr.rel (%p171) target = $region24
        $region23: #{tpu_custom_call.1} parent=11 // pred_region
          _
        $region24: #{tpu_custom_call.1} parent=11 // pred_fallthru
          _
        // Predicated region
        $region25: #{tpu_custom_call.1} parent=11 // pred_check
          %p174 = pneg %p124
        $region26: #{tpu_custom_call.1} parent=11 // pred_check_branch
          %176 = sbr.rel (%p174) target = $region28
        $region27: #{tpu_custom_call.1} parent=11 // pred_region
          _
        $region28: #{tpu_custom_call.1} parent=11 // pred_fallthru
          _
      $region12: #{tpu_custom_call.1} parent=5 // pred_fallthru
        _
      %p177 = scmp.lt.s32.totalorder %s14, 2
      // Predicated region
      $region29: #{tpu_custom_call.1} parent=5 // pred_check
        %p178 = pneg %p177
      $region30: #{tpu_custom_call.1} parent=5 // pred_check_branch
        %180 = sbr.rel (%p178) target = $region32
      $region31: #{tpu_custom_call.1} parent=5 // pred_region
        // Predicated region
        $region33: #{tpu_custom_call.1} parent=31 // pred_check
          %p181 = pneg %p34
        $region34: #{tpu_custom_call.1} parent=31 // pred_check_branch
          %183 = sbr.rel (%p181) target = $region36
        $region35: #{tpu_custom_call.1} parent=31 // pred_region
          %p184 = scmp.lt.s32.totalorder %s14, 1
          %s185 = scalar_select %p184, %s14, 1
          %s186 = smul.addr %s185, 2
          %s187 = smul.addr %s186, 4
          %s188 = scalar_lea.vmem %s0, %s187
        $region36: #{tpu_custom_call.1} parent=31 // pred_fallthru
          _
      $region32: #{tpu_custom_call.1} parent=5 // pred_fallthru
        _
      %p189 = scmp.le.s32.totalorder 1, %s14
      %p190 = scmp.lt.s32.totalorder %s14, 3
      %p191 = pnand %p189, %p190
      %p192 = pneg %p191
      // Predicated region
      $region37: #{tpu_custom_call.1} parent=5 // pred_check
        _
      $region38: #{tpu_custom_call.1} parent=5 // pred_check_branch
        %194 = sbr.rel (%p191) target = $region40
      $region39: #{tpu_custom_call.1} parent=5 // pred_region
        %s195 = ssub.s32 %s14, 1
        %p196 = scmp.lt.s32.totalorder %s19, 1
        %s197 = scalar_select %p196, %s19, 1
        %s198 = smul.addr %s197, 2
        %s199 = smul.addr %s198, 4
        %s200 = scalar_lea.vmem %s0, %s199
        %p201 = pneg %p40
        %p202 = pneg %p37
        %p203 = pneg %p61
        %p204 = pneg %p58
        %p205 = pneg %p82
        %p206 = pneg %p79
        %p207 = pneg %p103
        %p208 = pneg %p100
        %p209 = pneg %p124
        %p210 = pneg %p121
        %p211 = pneg %p150
        %p212 = pneg %p147
        %s213 = sand.u32 %s137, 1
        %s214 = scalar_lea.sflag [#allocation3], %s213
        %s215 = sand.u32 %s137, 1
        %s216 = smul.addr %s215, 8
        %s217 = scalar_lea.vmem [#allocation2], %s216
        %p218 = scmp.lt.s32.totalorder %s19, 1
        %s219 = scalar_select %p218, %s19, 1
        %s220 = smul.addr %s219, 2
        %s221 = smul.addr %s220, 4
        %s222 = scalar_lea.vmem %s0, %s221
        %v223 = vld [vmem:[%s222] sm:$0xff]
        %v224 = vld [vmem:[%s1] sm:$0x3]
        %226 = vset.pattern.permute.xlu0 0
        %227 = vperm.xlu0 %226, %v224
        %v228 = vpop.permute.xlu0 %227
        %v231 = vlaneseq
        %v232 = vshrl.u32 %v231, 7
        %v233 = vsub.s32 0, %v232
        %v234 = vrot.slane %v223, %v233
        %v235 = vlaneseq
        %v236 = vshrl.u32 %v235, 7
        %v237 = vsub.s32 4, %v236
        %v238 = vrot.slane %v223, %v237
        %v241 = vlaneseq
        %v242 = vshrl.u32 %v241, 7
        %v243 = vsub.s32 0, %v242
        %v244 = vrot.slane %v234, %v243
        %v245 = vlaneseq
        %v246 = vshrl.u32 %v245, 7
        %v247 = vsub.s32 0, %v246
        %v248 = vrot.slane %v238, %v247
        %v249 = vmul.f32 %v228, %v244
        %v250 = vmul.f32 %v228, %v248
        %251 = vset.pattern.permute.xlu0 1
        %252 = vperm.xlu0 %251, %v224
        %v253 = vpop.permute.xlu0 %252
        %v255 = vlaneseq
        %v256 = vshrl.u32 %v255, 7
        %v257 = vsub.s32 1, %v256
        %v258 = vrot.slane %v223, %v257
        %v259 = vlaneseq
        %v260 = vshrl.u32 %v259, 7
        %v261 = vsub.s32 5, %v260
        %v262 = vrot.slane %v223, %v261
        %v265 = vlaneseq
        %v266 = vshrl.u32 %v265, 7
        %v267 = vsub.s32 1, %v266
        %v268 = vrot.slane %v258, %v267
        %v269 = vlaneseq
        %v270 = vshrl.u32 %v269, 7
        %v271 = vsub.s32 1, %v270
        %v272 = vrot.slane %v262, %v271
        %v273 = vmul.f32 %v253, %v268
        %v274 = vmul.f32 %v253, %v272
        %v275 = vadd.f32 %v249, %v273
        %v276 = vadd.f32 %v250, %v274
        %277 = vset.pattern.permute.xlu0 2
        %278 = vperm.xlu0 %277, %v224
        %v279 = vpop.permute.xlu0 %278
        %v281 = vlaneseq
        %v282 = vshrl.u32 %v281, 7
        %v283 = vsub.s32 2, %v282
        %v284 = vrot.slane %v223, %v283
        %v285 = vlaneseq
        %v286 = vshrl.u32 %v285, 7
        %v287 = vsub.s32 6, %v286
        %v288 = vrot.slane %v223, %v287
        %v291 = vlaneseq
        %v292 = vshrl.u32 %v291, 7
        %v293 = vsub.s32 2, %v292
        %v294 = vrot.slane %v284, %v293
        %v295 = vlaneseq
        %v296 = vshrl.u32 %v295, 7
        %v297 = vsub.s32 2, %v296
        %v298 = vrot.slane %v288, %v297
        %v299 = vmul.f32 %v279, %v294
        %v300 = vmul.f32 %v279, %v298
        %v301 = vadd.f32 %v275, %v299
        %v302 = vadd.f32 %v276, %v300
        %303 = vset.pattern.permute.xlu0 3
        %304 = vperm.xlu0 %303, %v224
        %v305 = vpop.permute.xlu0 %304
        %v307 = vlaneseq
        %v308 = vshrl.u32 %v307, 7
        %v309 = vsub.s32 3, %v308
        %v310 = vrot.slane %v223, %v309
        %v311 = vlaneseq
        %v312 = vshrl.u32 %v311, 7
        %v313 = vsub.s32 7, %v312
        %v314 = vrot.slane %v223, %v313
        %v317 = vlaneseq
        %v318 = vshrl.u32 %v317, 7
        %v319 = vsub.s32 3, %v318
        %v320 = vrot.slane %v310, %v319
        %v321 = vlaneseq
        %v322 = vshrl.u32 %v321, 7
        %v323 = vsub.s32 3, %v322
        %v324 = vrot.slane %v314, %v323
        %v325 = vmul.f32 %v305, %v320
        %v326 = vmul.f32 %v305, %v324
        %v327 = vadd.f32 %v301, %v325
        %v328 = vadd.f32 %v302, %v326
        %v329 = vld [vmem:[%s2] sm:$0x3]
        %331 = vset.pattern.permute.xlu0 0
        %332 = vperm.xlu0 %331, %v329
        %v333 = vpop.permute.xlu0 %332
        %v335 = vadd.f32 %v327, %v333
        %v336 = vadd.f32 %v328, %v333
        %v337 = vsub.f32 0.0, %v335
        %v338 = vsub.f32 0.0, %v336
        %v339 = vmul.f32 %v337, 1.442695
        %v340 = vpow.pop %v339
        %v341 = vmul.f32 %v338, 1.442695
        %v342 = vpow.pop %v341
        %v343 = vadd.f32 %v340, 1.0
        %v344 = vadd.f32 %v342, 1.0
        %v345 = vrcp.pop %v343
        %v346 = vmul.f32 %v335, %v345
        %v347 = vrcp.pop %v344
        %v348 = vmul.f32 %v336, %v347
        %v349 = vlaneseq
        %v350 = vand.u32 %v349, 127
        %v351 = vadd.s32 %v350, 128
        %vm352 = vcmp.lt.s32.totalorder %v350, 0
        %v353 = vsub.s32 0, %v350
        %v354 = vsel %vm352, %v353, %v350
        %v355 = vshrl.u32 %v354, 4
        %v356 = vand.u32 %v354, 15
        %v357 = vsub.s32 0, %v356
        %v358 = vsel %vm352, %v357, %v356
        %vm359 = vcmp.lt.s32.totalorder %v351, 0
        %v360 = vsub.s32 0, %v351
        %v361 = vsel %vm359, %v360, %v351
        %v362 = vshrl.u32 %v361, 4
        %v363 = vand.u32 %v361, 15
        %v364 = vsub.s32 0, %v363
        %v365 = vsel %vm359, %v364, %v363
        %vm366 = vcmp.ne.s32.totalorder %v358, 0
        %vm367 = vcmp.ne.s32.totalorder %v365, 0
        %vm368 = vcmp.lt.s32.totalorder %v358, 0
        %vm369 = vcmp.lt.s32.totalorder %v365, 0
        %vm370 = vmand %vm368, %vm366
        %vm371 = vmand %vm369, %vm367
        %v372 = vadd.s32 %v358, 16
        %v373 = vadd.s32 %v365, 16
        %v374 = vsel %vm370, %v372, %v358
        %v375 = vsel %vm371, %v373, %v365
        %vm376 = vcmp.lt.s32.totalorder %v374, 15
        %vm377 = vcmp.lt.s32.totalorder %v375, 15
        %380 = vrot.lane.b32.xlu0 %v346, 127
        %v381 = vpop.permute.xlu0 %380
        %382 = vrot.lane.b32.xlu0 %v348, 127
        %v383 = vpop.permute.xlu0 %382
        %vm384 = vcmask 1039360
        %v385 = vsel %vm384, %v381, %v383
        %v388 = vsel %vm384, %v383, -inf
        %v389 = vsel %vm376, %v385, -inf
        %v390 = vsel %vm377, %v388, -inf
        %vm391 = vcmp.ge.s32.totalorder %v374, 1
        %vm392 = vcmp.ge.s32.totalorder %v375, 1
        %393 = vrot.lane.b32.xlu0 %v346, 1
        %v394 = vpop.permute.xlu0 %393
        %395 = vrot.lane.b32.xlu0 %v348, 1
        %v396 = vpop.permute.xlu0 %395
        %vm397 = vcmask 7168
        %v398 = vsel %vm397, %v394, %v396
        %v401 = vsel %vm397, -inf, %v394
        %v402 = vsel %vm391, %v401, -inf
        %v403 = vsel %vm392, %v398, -inf
        %v404 = vmax.f32 %v389, %v402
        %v405 = vmax.f32 %v390, %v403
        %v406 = vmax.f32 %v346, %v404
        %v407 = vmax.f32 %v348, %v405
        %vm408 = vcmp.lt.s32.totalorder %v374, 14
        %vm409 = vcmp.lt.s32.totalorder %v375, 14
        %410 = vrot.lane.b32.xlu0 %v346, 126
        %v411 = vpop.permute.xlu0 %410
        %412 = vrot.lane.b32.xlu0 %v348, 126
        %v413 = vpop.permute.xlu0 %412
        %vm414 = vcmask 1031168
        %v415 = vsel %vm414, %v411, %v413
        %v418 = vsel %vm414, %v413, -inf
        %v419 = vsel %vm408, %v415, -inf
        %v420 = vsel %vm409, %v418, -inf
        %vm421 = vcmp.ge.s32.totalorder %v374, 2
        %vm422 = vcmp.ge.s32.totalorder %v375, 2
        %423 = vrot.lane.b32.xlu0 %v346, 2
        %v424 = vpop.permute.xlu0 %423
        %425 = vrot.lane.b32.xlu0 %v348, 2
        %v426 = vpop.permute.xlu0 %425
        %vm427 = vcmask 15360
        %v428 = vsel %vm427, %v424, %v426
        %v431 = vsel %vm427, -inf, %v424
        %v432 = vsel %vm421, %v431, -inf
        %v433 = vsel %vm422, %v428, -inf
        %v434 = vmax.f32 %v419, %v432
        %v435 = vmax.f32 %v420, %v433
        %v436 = vmax.f32 %v406, %v434
        %v437 = vmax.f32 %v407, %v435
        %440 = vrot.lane.b32.xlu0 %v436, 112
        %v441 = vpop.permute.xlu0 %440
        %442 = vrot.lane.b32.xlu0 %v437, 112
        %v443 = vpop.permute.xlu0 %442
        %vm444 = vcmask 916480
        %v445 = vsel %vm444, %v441, %v443
        %v448 = vsel %vm444, %v443, -inf
        %449 = vrot.lane.b32.xlu0 %v436, 16
        %v450 = vpop.permute.xlu0 %449
        %451 = vrot.lane.b32.xlu0 %v437, 16
        %v452 = vpop.permute.xlu0 %451
        %vm453 = vcmask 130048
        %v454 = vsel %vm453, %v450, %v452
        %v457 = vsel %vm453, -inf, %v450
        %v458 = vmax.f32 %v445, %v457
        %v459 = vmax.f32 %v448, %v454
        %v460 = vmax.f32 %v436, %v458
        %v461 = vmax.f32 %v437, %v459
        %462 = vrot.lane.b32.xlu0 %v436, 96
        %v463 = vpop.permute.xlu0 %462
        %464 = vrot.lane.b32.xlu0 %v437, 96
        %v465 = vpop.permute.xlu0 %464
        %vm466 = vcmask 785408
        %v467 = vsel %vm466, %v463, %v465
        %v470 = vsel %vm466, %v465, -inf
        %471 = vrot.lane.b32.xlu0 %v436, 32
        %v472 = vpop.permute.xlu0 %471
        %473 = vrot.lane.b32.xlu0 %v437, 32
        %v474 = vpop.permute.xlu0 %473
        %vm475 = vcmask 261120
        %v476 = vsel %vm475, %v472, %v474
        %v479 = vsel %vm475, -inf, %v472
        %v480 = vmax.f32 %v467, %v479
        %v481 = vmax.f32 %v470, %v476
        %v482 = vmax.f32 %v460, %v480
        %v483 = vmax.f32 %v461, %v481
        %vm484 = vcmp.lt.s32.totalorder %v374, 13
        %vm485 = vcmp.lt.s32.totalorder %v375, 13
        %486 = vrot.lane.b32.xlu0 %v346, 125
        %v487 = vpop.permute.xlu0 %486
        %488 = vrot.lane.b32.xlu0 %v348, 125
        %v489 = vpop.permute.xlu0 %488
        %vm490 = vcmask 1022976
        %v491 = vsel %vm490, %v487, %v489
        %v494 = vsel %vm490, %v489, -inf
        %v495 = vsel %vm484, %v491, -inf
        %v496 = vsel %vm485, %v494, -inf
        %vm497 = vcmp.ge.s32.totalorder %v374, 3
        %vm498 = vcmp.ge.s32.totalorder %v375, 3
        %499 = vrot.lane.b32.xlu0 %v346, 3
        %v500 = vpop.permute.xlu0 %499
        %501 = vrot.lane.b32.xlu0 %v348, 3
        %v502 = vpop.permute.xlu0 %501
        %vm503 = vcmask 23552
        %v504 = vsel %vm503, %v500, %v502
        %v507 = vsel %vm503, -inf, %v500
        %v508 = vsel %vm497, %v507, -inf
        %v509 = vsel %vm498, %v504, -inf
        %v510 = vmax.f32 %v495, %v508
        %v511 = vmax.f32 %v496, %v509
        %v512 = vmax.f32 %v436, %v510
        %v513 = vmax.f32 %v437, %v511
        %vm514 = vcmp.lt.s32.totalorder %v374, 12
        %vm515 = vcmp.lt.s32.totalorder %v375, 12
        %516 = vrot.lane.b32.xlu0 %v346, 124
        %v517 = vpop.permute.xlu0 %516
        %518 = vrot.lane.b32.xlu0 %v348, 124
        %v519 = vpop.permute.xlu0 %518
        %vm520 = vcmask 1014784
        %v521 = vsel %vm520, %v517, %v519
        %v524 = vsel %vm520, %v519, -inf
        %v525 = vsel %vm514, %v521, -inf
        %v526 = vsel %vm515, %v524, -inf
        %vm527 = vcmp.ge.s32.totalorder %v374, 4
        %vm528 = vcmp.ge.s32.totalorder %v375, 4
        %529 = vrot.lane.b32.xlu0 %v346, 4
        %v530 = vpop.permute.xlu0 %529
        %531 = vrot.lane.b32.xlu0 %v348, 4
        %v532 = vpop.permute.xlu0 %531
        %vm533 = vcmask 31744
        %v534 = vsel %vm533, %v530, %v532
        %v537 = vsel %vm533, -inf, %v530
        %v538 = vsel %vm527, %v537, -inf
        %v539 = vsel %vm528, %v534, -inf
        %v540 = vmax.f32 %v525, %v538
        %v541 = vmax.f32 %v526, %v539
        %v542 = vmax.f32 %v512, %v540
        %v543 = vmax.f32 %v513, %v541
        %546 = vrot.lane.b32.xlu0 %v542, 112
        %v547 = vpop.permute.xlu0 %546
        %548 = vrot.lane.b32.xlu0 %v543, 112
        %v549 = vpop.permute.xlu0 %548
        %v550 = vsel %vm444, %v547, %v549
        %v553 = vsel %vm444, %v549, -inf
        %554 = vrot.lane.b32.xlu0 %v542, 16
        %v555 = vpop.permute.xlu0 %554
        %556 = vrot.lane.b32.xlu0 %v543, 16
        %v557 = vpop.permute.xlu0 %556
        %v558 = vsel %vm453, %v555, %v557
        %v561 = vsel %vm453, -inf, %v555
        %v562 = vmax.f32 %v550, %v561
        %v563 = vmax.f32 %v553, %v558
        %v564 = vmax.f32 %v542, %v562
        %v565 = vmax.f32 %v543, %v563
        %566 = vrot.lane.b32.xlu0 %v542, 96
        %v567 = vpop.permute.xlu0 %566
        %568 = vrot.lane.b32.xlu0 %v543, 96
        %v569 = vpop.permute.xlu0 %568
        %v570 = vsel %vm466, %v567, %v569
        %v573 = vsel %vm466, %v569, -inf
        %574 = vrot.lane.b32.xlu0 %v542, 32
        %v575 = vpop.permute.xlu0 %574
        %576 = vrot.lane.b32.xlu0 %v543, 32
        %v577 = vpop.permute.xlu0 %576
        %v578 = vsel %vm475, %v575, %v577
        %v581 = vsel %vm475, -inf, %v575
        %v582 = vmax.f32 %v570, %v581
        %v583 = vmax.f32 %v573, %v578
        %v584 = vmax.f32 %v564, %v582
        %v585 = vmax.f32 %v565, %v583
        %586 = vrot.lane.b32.xlu0 %v542, 80
        %v587 = vpop.permute.xlu0 %586
        %588 = vrot.lane.b32.xlu0 %v543, 80
        %v589 = vpop.permute.xlu0 %588
        %vm590 = vcmask 654336
        %v591 = vsel %vm590, %v587, %v589
        %v594 = vsel %vm590, %v589, -inf
        %595 = vrot.lane.b32.xlu0 %v542, 48
        %v596 = vpop.permute.xlu0 %595
        %597 = vrot.lane.b32.xlu0 %v543, 48
        %v598 = vpop.permute.xlu0 %597
        %vm599 = vcmask 392192
        %v600 = vsel %vm599, %v596, %v598
        %v603 = vsel %vm599, -inf, %v596
        %v604 = vmax.f32 %v591, %v603
        %v605 = vmax.f32 %v594, %v600
        %v606 = vmax.f32 %v584, %v604
        %v607 = vmax.f32 %v585, %v605
        %608 = vrot.lane.b32.xlu0 %v542, 64
        %v609 = vpop.permute.xlu0 %608
        %610 = vrot.lane.b32.xlu0 %v543, 64
        %v611 = vpop.permute.xlu0 %610
        %vm612 = vcmask 523264
        %v613 = vsel %vm612, %v609, %v611
        %v616 = vsel %vm612, %v611, -inf
        %v618 = vsel %vm612, -inf, %v609
        %v619 = vmax.f32 %v613, %v618
        %v620 = vmax.f32 %v616, %v613
        %v621 = vmax.f32 %v606, %v619
        %v622 = vmax.f32 %v607, %v620
        %vm623 = vcmp.lt.s32.totalorder %v374, 11
        %vm624 = vcmp.lt.s32.totalorder %v375, 11
        %625 = vrot.lane.b32.xlu0 %v346, 123
        %v626 = vpop.permute.xlu0 %625
        %627 = vrot.lane.b32.xlu0 %v348, 123
        %v628 = vpop.permute.xlu0 %627
        %vm629 = vcmask 1006592
        %v630 = vsel %vm629, %v626, %v628
        %v633 = vsel %vm629, %v628, -inf
        %v634 = vsel %vm623, %v630, -inf
        %v635 = vsel %vm624, %v633, -inf
        %vm636 = vcmp.ge.s32.totalorder %v374, 5
        %vm637 = vcmp.ge.s32.totalorder %v375, 5
        %638 = vrot.lane.b32.xlu0 %v346, 5
        %v639 = vpop.permute.xlu0 %638
        %640 = vrot.lane.b32.xlu0 %v348, 5
        %v641 = vpop.permute.xlu0 %640
        %vm642 = vcmask 39936
        %v643 = vsel %vm642, %v639, %v641
        %v646 = vsel %vm642, -inf, %v639
        %v647 = vsel %vm636, %v646, -inf
        %v648 = vsel %vm637, %v643, -inf
        %v649 = vmax.f32 %v634, %v647
        %v650 = vmax.f32 %v635, %v648
        %v651 = vmax.f32 %v542, %v649
        %v652 = vmax.f32 %v543, %v650
        %vm653 = vcmp.lt.s32.totalorder %v374, 10
        %vm654 = vcmp.lt.s32.totalorder %v375, 10
        %655 = vrot.lane.b32.xlu0 %v346, 122
        %v656 = vpop.permute.xlu0 %655
        %657 = vrot.lane.b32.xlu0 %v348, 122
        %v658 = vpop.permute.xlu0 %657
        %vm659 = vcmask 998400
        %v660 = vsel %vm659, %v656, %v658
        %v663 = vsel %vm659, %v658, -inf
        %v664 = vsel %vm653, %v660, -inf
        %v665 = vsel %vm654, %v663, -inf
        %vm666 = vcmp.ge.s32.totalorder %v374, 6
        %vm667 = vcmp.ge.s32.totalorder %v375, 6
        %668 = vrot.lane.b32.xlu0 %v346, 6
        %v669 = vpop.permute.xlu0 %668
        %670 = vrot.lane.b32.xlu0 %v348, 6
        %v671 = vpop.permute.xlu0 %670
        %vm672 = vcmask 48128
        %v673 = vsel %vm672, %v669, %v671
        %v676 = vsel %vm672, -inf, %v669
        %v677 = vsel %vm666, %v676, -inf
        %v678 = vsel %vm667, %v673, -inf
        %v679 = vmax.f32 %v664, %v677
        %v680 = vmax.f32 %v665, %v678
        %v681 = vmax.f32 %v651, %v679
        %v682 = vmax.f32 %v652, %v680
        %685 = vrot.lane.b32.xlu0 %v681, 112
        %v686 = vpop.permute.xlu0 %685
        %687 = vrot.lane.b32.xlu0 %v682, 112
        %v688 = vpop.permute.xlu0 %687
        %v689 = vsel %vm444, %v686, %v688
        %v692 = vsel %vm444, %v688, -inf
        %693 = vrot.lane.b32.xlu0 %v681, 16
        %v694 = vpop.permute.xlu0 %693
        %695 = vrot.lane.b32.xlu0 %v682, 16
        %v696 = vpop.permute.xlu0 %695
        %v697 = vsel %vm453, %v694, %v696
        %v700 = vsel %vm453, -inf, %v694
        %v701 = vmax.f32 %v689, %v700
        %v702 = vmax.f32 %v692, %v697
        %v703 = vmax.f32 %v681, %v701
        %v704 = vmax.f32 %v682, %v702
        %705 = vrot.lane.b32.xlu0 %v681, 96
        %v706 = vpop.permute.xlu0 %705
        %707 = vrot.lane.b32.xlu0 %v682, 96
        %v708 = vpop.permute.xlu0 %707
        %v709 = vsel %vm466, %v706, %v708
        %v712 = vsel %vm466, %v708, -inf
        %713 = vrot.lane.b32.xlu0 %v681, 32
        %v714 = vpop.permute.xlu0 %713
        %715 = vrot.lane.b32.xlu0 %v682, 32
        %v716 = vpop.permute.xlu0 %715
        %v717 = vsel %vm475, %v714, %v716
        %v720 = vsel %vm475, -inf, %v714
        %v721 = vmax.f32 %v709, %v720
        %v722 = vmax.f32 %v712, %v717
        %v723 = vmax.f32 %v703, %v721
        %v724 = vmax.f32 %v704, %v722
        %725 = vrot.lane.b32.xlu0 %v681, 80
        %v726 = vpop.permute.xlu0 %725
        %727 = vrot.lane.b32.xlu0 %v682, 80
        %v728 = vpop.permute.xlu0 %727
        %v729 = vsel %vm590, %v726, %v728
        %v732 = vsel %vm590, %v728, -inf
        %733 = vrot.lane.b32.xlu0 %v681, 48
        %v734 = vpop.permute.xlu0 %733
        %735 = vrot.lane.b32.xlu0 %v682, 48
        %v736 = vpop.permute.xlu0 %735
        %v737 = vsel %vm599, %v734, %v736
        %v740 = vsel %vm599, -inf, %v734
        %v741 = vmax.f32 %v729, %v740
        %v742 = vmax.f32 %v732, %v737
        %v743 = vmax.f32 %v723, %v741
        %v744 = vmax.f32 %v724, %v742
        %745 = vrot.lane.b32.xlu0 %v681, 64
        %v746 = vpop.permute.xlu0 %745
        %747 = vrot.lane.b32.xlu0 %v682, 64
        %v748 = vpop.permute.xlu0 %747
        %v749 = vsel %vm612, %v746, %v748
        %v752 = vsel %vm612, %v748, -inf
        %v754 = vsel %vm612, -inf, %v746
        %v755 = vmax.f32 %v749, %v754
        %v756 = vmax.f32 %v752, %v749
        %v757 = vmax.f32 %v743, %v755
        %v758 = vmax.f32 %v744, %v756
        %v760 = vsel %vm599, %v736, -inf
        %v762 = vsel %vm590, -inf, %v726
        %v763 = vmax.f32 %v737, %v762
        %v764 = vmax.f32 %v760, %v729
        %v765 = vmax.f32 %v757, %v763
        %v766 = vmax.f32 %v758, %v764
        %v768 = vsel %vm475, %v716, -inf
        %v770 = vsel %vm466, -inf, %v706
        %v771 = vmax.f32 %v717, %v770
        %v772 = vmax.f32 %v768, %v709
        %v773 = vmax.f32 %v765, %v771
        %v774 = vmax.f32 %v766, %v772
        %v775 = vld [vmem:[%s3] sm:$0xf]
        %777 = vset.pattern.permute.xlu0 0
        %778 = vperm.xlu0 %777, %v775
        %v779 = vpop.permute.xlu0 %778
        %v781 = vlaneseq
        %v782 = vshrl.u32 %v781, 7
        %v783 = vsub.s32 0, %v782
        %v784 = vrot.slane %v346, %v783
        %v785 = vlaneseq
        %v786 = vshrl.u32 %v785, 7
        %v787 = vsub.s32 0, %v786
        %v788 = vrot.slane %v348, %v787
        %v789 = vmul.f32 %v779, %v784
        %v790 = vmul.f32 %v779, %v788
        %791 = vset.pattern.permute.xlu0 1
        %792 = vperm.xlu0 %791, %v775
        %v793 = vpop.permute.xlu0 %792
        %v795 = vlaneseq
        %v796 = vshrl.u32 %v795, 7
        %v797 = vsub.s32 1, %v796
        %v798 = vrot.slane %v346, %v797
        %v799 = vlaneseq
        %v800 = vshrl.u32 %v799, 7
        %v801 = vsub.s32 1, %v800
        %v802 = vrot.slane %v348, %v801
        %v803 = vmul.f32 %v793, %v798
        %v804 = vmul.f32 %v793, %v802
        %v805 = vadd.f32 %v789, %v803
        %v806 = vadd.f32 %v790, %v804
        %s807 = scalar_lea.vmem %s3, 4
        %v808 = vld [vmem:[%s807] sm:$0xf]
        %810 = vset.pattern.permute.xlu0 0
        %811 = vperm.xlu0 %810, %v808
        %v812 = vpop.permute.xlu0 %811
        %v814 = vlaneseq
        %v815 = vshrl.u32 %v814, 7
        %v816 = vsub.s32 0, %v815
        %v817 = vrot.slane %v482, %v816
        %v818 = vlaneseq
        %v819 = vshrl.u32 %v818, 7
        %v820 = vsub.s32 0, %v819
        %v821 = vrot.slane %v483, %v820
        %v822 = vmul.f32 %v812, %v817
        %v823 = vmul.f32 %v812, %v821
        %824 = vset.pattern.permute.xlu0 1
        %825 = vperm.xlu0 %824, %v808
        %v826 = vpop.permute.xlu0 %825
        %v828 = vlaneseq
        %v829 = vshrl.u32 %v828, 7
        %v830 = vsub.s32 1, %v829
        %v831 = vrot.slane %v482, %v830
        %v832 = vlaneseq
        %v833 = vshrl.u32 %v832, 7
        %v834 = vsub.s32 1, %v833
        %v835 = vrot.slane %v483, %v834
        %v836 = vmul.f32 %v826, %v831
        %v837 = vmul.f32 %v826, %v835
        %v838 = vadd.f32 %v822, %v836
        %v839 = vadd.f32 %v823, %v837
        %v840 = vadd.f32 %v805, %v838
        %v841 = vadd.f32 %v806, %v839
        %s842 = scalar_lea.vmem %s3, 8
        %v843 = vld [vmem:[%s842] sm:$0xf]
        %845 = vset.pattern.permute.xlu0 0
        %846 = vperm.xlu0 %845, %v843
        %v847 = vpop.permute.xlu0 %846
        %v849 = vlaneseq
        %v850 = vshrl.u32 %v849, 7
        %v851 = vsub.s32 0, %v850
        %v852 = vrot.slane %v621, %v851
        %v853 = vlaneseq
        %v854 = vshrl.u32 %v853, 7
        %v855 = vsub.s32 0, %v854
        %v856 = vrot.slane %v622, %v855
        %v857 = vmul.f32 %v847, %v852
        %v858 = vmul.f32 %v847, %v856
        %859 = vset.pattern.permute.xlu0 1
        %860 = vperm.xlu0 %859, %v843
        %v861 = vpop.permute.xlu0 %860
        %v863 = vlaneseq
        %v864 = vshrl.u32 %v863, 7
        %v865 = vsub.s32 1, %v864
        %v866 = vrot.slane %v621, %v865
        %v867 = vlaneseq
        %v868 = vshrl.u32 %v867, 7
        %v869 = vsub.s32 1, %v868
        %v870 = vrot.slane %v622, %v869
        %v871 = vmul.f32 %v861, %v866
        %v872 = vmul.f32 %v861, %v870
        %v873 = vadd.f32 %v857, %v871
        %v874 = vadd.f32 %v858, %v872
        %v875 = vadd.f32 %v840, %v873
        %v876 = vadd.f32 %v841, %v874
        %s877 = scalar_lea.vmem %s3, 12
        %v878 = vld [vmem:[%s877] sm:$0xf]
        %880 = vset.pattern.permute.xlu0 0
        %881 = vperm.xlu0 %880, %v878
        %v882 = vpop.permute.xlu0 %881
        %v884 = vlaneseq
        %v885 = vshrl.u32 %v884, 7
        %v886 = vsub.s32 0, %v885
        %v887 = vrot.slane %v773, %v886
        %v888 = vlaneseq
        %v889 = vshrl.u32 %v888, 7
        %v890 = vsub.s32 0, %v889
        %v891 = vrot.slane %v774, %v890
        %v892 = vmul.f32 %v882, %v887
        %v893 = vmul.f32 %v882, %v891
        %894 = vset.pattern.permute.xlu0 1
        %895 = vperm.xlu0 %894, %v878
        %v896 = vpop.permute.xlu0 %895
        %v898 = vlaneseq
        %v899 = vshrl.u32 %v898, 7
        %v900 = vsub.s32 1, %v899
        %v901 = vrot.slane %v773, %v900
        %v902 = vlaneseq
        %v903 = vshrl.u32 %v902, 7
        %v904 = vsub.s32 1, %v903
        %v905 = vrot.slane %v774, %v904
        %v906 = vmul.f32 %v896, %v901
        %v907 = vmul.f32 %v896, %v905
        %v908 = vadd.f32 %v892, %v906
        %v909 = vadd.f32 %v893, %v907
        %v910 = vadd.f32 %v875, %v908
        %v911 = vadd.f32 %v876, %v909
        %v912 = vld [vmem:[%s4] sm:$0xf]
        %914 = vset.pattern.permute.xlu0 0
        %915 = vperm.xlu0 %914, %v912
        %v916 = vpop.permute.xlu0 %915
        %v918 = vadd.f32 %v910, %v916
        %v919 = vadd.f32 %v911, %v916
        %v920 = vsub.f32 0.0, %v918
        %v921 = vsub.f32 0.0, %v919
        %v922 = vmul.f32 %v920, 1.442695
        %v923 = vpow.pop %v922
        %v924 = vmul.f32 %v921, 1.442695
        %v925 = vpow.pop %v924
        %v926 = vadd.f32 %v923, 1.0
        %v927 = vadd.f32 %v925, 1.0
        %v928 = vrcp.pop %v926
        %v929 = vmul.f32 %v918, %v928
        %v930 = vrcp.pop %v927
        %v931 = vmul.f32 %v919, %v930
        %v934 = vcombine.low %v929, %v931
        %936 = vst [vmem:[%s217] sm:$0xff] %v934
        %s937 = sand.u32 %s137, 1
        %s938 = scalar_lea.sflag [#allocation3], %s937
        %s939 = sand.u32 %s137, 1
        %s940 = smul.addr %s939, 8
        %s941 = scalar_lea.vmem [#allocation2], %s940
        // Predicated region
        $region41: #{tpu_custom_call.1} parent=39 // pred_check
          %p942 = pneg %p147
        $region42: #{tpu_custom_call.1} parent=39 // pred_check_branch
          %944 = sbr.rel (%p942) target = $region44
        $region43: #{tpu_custom_call.1} parent=39 // pred_region
          %s946 = ssub.s32 128, 128
          %947 = vsyncadd %s938, %s946
          %s948 = smul.addr %s19, 2
          %s949 = smul.addr %s948, 64
          %s950 = scalar_lea.hbm %s5, %s949
          %s952 = sshll.u32 %s941, 4
          %s953 = int_to_ptr.vmem [resolvable:$true] %s952
          %955 = dma.vmem_to_hbm [thread:$0]  %s953, 128, %s950, %s938
        $region44: #{tpu_custom_call.1} parent=39 // pred_fallthru
          _
      $region40: #{tpu_custom_call.1} parent=5 // pred_fallthru
        _
      %p956 = scmp.le.s32.totalorder 2, %s14
      // Predicated region
      $region45: #{tpu_custom_call.1} parent=5 // pred_check
        %p957 = pneg %p956
      $region46: #{tpu_custom_call.1} parent=5 // pred_check_branch
        %959 = sbr.rel (%p957) target = $region48
      $region47: #{tpu_custom_call.1} parent=5 // pred_region
        %s960 = ssub.s32 %s14, 2
        // Predicated region
        $region49: #{tpu_custom_call.1} parent=47 // pred_check
          %p961 = pneg %p153
        $region50: #{tpu_custom_call.1} parent=47 // pred_check_branch
          %963 = sbr.rel (%p961) target = $region52
        $region51: #{tpu_custom_call.1} parent=47 // pred_region
          %s964 = sand.u32 %s138, 1
          %s965 = scalar_lea.sflag [#allocation3], %s964
          %s966 = sand.u32 %s138, 1
          %s967 = smul.addr %s966, 8
          %s968 = scalar_lea.vmem [#allocation2], %s967
          %969 = dma.done %s965, 128
        $region52: #{tpu_custom_call.1} parent=47 // pred_fallthru
          _
      $region48: #{tpu_custom_call.1} parent=5 // pred_fallthru
        _
    $region6: #{tpu_custom_call.1} parent=1 // loop_footer
      %s18 = sadd.s32 1, %s14
    $region7: #{tpu_custom_call.1} parent=1 // loop_footer_branch
      %13 = sbr.rel target = $region3
    $region8: #{tpu_custom_call.1} parent=1 // loop_exit
      _
    %970 = vsyncpa [#allocation3], 1
    %s971 = scalar_lea.sflag [#allocation3], 1
    %972 = vsyncpa %s971, 1

</llo_original>
